<compile_context>
chip_gen: v7x
topology: tpu7x:2x2x1
jax: 0.10.0
libtpu: 0.0.40
codegen_flags: <defaults>
</compile_context>

<pallas_src>
import functools

import jax
import jax.numpy as jnp
from jax import lax
from jax.experimental import pallas as pl
from jax.experimental.pallas import tpu as pltpu


# ---------------------------------------------------------------------------
# Fused MMoE kernel
# ---------------------------------------------------------------------------
def _mmoe_kernel(n_tasks, units,
                 x_ref, wih_ref, whh_ref, bl_ref,
                 wg_ref, bg_ref, w1_ref, b1_ref, w2_ref, b2_ref,
                 o_ref):
    """Fused MMoE forward for one batch tile.

    x_ref   : (T, TB, D)  time-major input tile
    wih_ref : (D, 4G)     packed input->gates weights of all 2*n_tasks LSTMs
    whh_ref : (G, 4G)     block-diagonal hidden->gates weights
    bl_ref  : (1, 4G)     packed (b_ih + b_hh)
    wg_ref  : (n_tasks*U, n_tasks^2)  block-diag per-task gate linears
    bg_ref  : (1, n_tasks^2)
    w1_ref  : (n_tasks*U, n_tasks*M)  block-diag tower layer 1
    b1_ref  : (1, n_tasks*M)
    w2_ref  : (n_tasks*M, n_tasks*O)  block-diag tower layer 2
    b2_ref  : (1, n_tasks*O)
    o_ref   : (TB, n_tasks*O)         task-packed sigmoid outputs

    The 4G axis is gate-grouped [i | f | g | o]; inside each group of width G
    the 2*n_tasks LSTMs are laid out in order (experts first, gate-LSTMs last),
    matching the column layout of the packed hidden/cell state (TB, G).
    """
    T, TB, _ = x_ref.shape
    G = whh_ref.shape[0]                 # 2 * n_tasks * units
    U = units
    EU = n_tasks * U

    wih = wih_ref[...]
    whh = whh_ref[...]
    bl = bl_ref[...]

    # ---- all 2*n_tasks LSTMs as a single recurrence over time --------------
    def step(t, carry):
        h, c = carry
        x_t = x_ref[t]                                           # (TB, D)
        z = (jnp.dot(x_t, wih, preferred_element_type=jnp.float32)
             + jnp.dot(h, whh, preferred_element_type=jnp.float32)
             + bl)                                               # (TB, 4G)
        i_g = jax.nn.sigmoid(z[:, 0 * G:1 * G])
        f_g = jax.nn.sigmoid(z[:, 1 * G:2 * G])
        g_g = jnp.tanh(z[:, 2 * G:3 * G])
        o_g = jax.nn.sigmoid(z[:, 3 * G:4 * G])
        c = f_g * c + i_g * g_g
        h = o_g * jnp.tanh(c)
        return h, c

    h0 = jnp.zeros((TB, G), jnp.float32)
    c0 = jnp.zeros((TB, G), jnp.float32)
    h_last, _ = lax.fori_loop(0, T, step, (h0, c0), unroll=True)

    he = h_last[:, :EU]        # expert hidden states, lane-packed per expert
    hg = h_last[:, EU:]        # gate-LSTM hidden states, lane-packed per task

    # ---- all task gates: one block-diagonal matmul, per-task softmax -------
    logits = jnp.dot(hg, wg_ref[...],
                     preferred_element_type=jnp.float32) + bg_ref[...]

    mixes = []
    for i in range(n_tasks):
        li = logits[:, i * n_tasks:(i + 1) * n_tasks]
        li = li - jnp.max(li, axis=1, keepdims=True)
        ei = jnp.exp(li)
        coef = ei / jnp.sum(ei, axis=1, keepdims=True)           # (TB, n_tasks)
        mix = coef[:, 0:1] * he[:, 0:U]
        for k in range(1, n_tasks):
            mix = mix + coef[:, k:k + 1] * he[:, k * U:(k + 1) * U]
        mixes.append(mix)
    mix_all = jnp.concatenate(mixes, axis=1)                     # (TB, n_tasks*U)

    # ---- all task towers: Linear -> LeakyReLU(0.01) -> Linear -> Sigmoid ---
    h1 = jnp.dot(mix_all, w1_ref[...],
                 preferred_element_type=jnp.float32) + b1_ref[...]
    h1 = jnp.where(h1 > 0, h1, 0.01 * h1)
    out = jnp.dot(h1, w2_ref[...],
                  preferred_element_type=jnp.float32) + b2_ref[...]
    o_ref[...] = jax.nn.sigmoid(out).astype(o_ref.dtype)


# ---------------------------------------------------------------------------
# Wrapper: batch-gridded pallas_call with weights resident in VMEM
# ---------------------------------------------------------------------------
def mmoe_forward(x, packed, *, n_tasks, units, tile_b=None):
    """x: (B, T, D) batch-first. Returns a list of n_tasks (B, O) arrays."""
    B, T, D = x.shape
    U = units
    G = packed["whh"].shape[0]
    G4 = packed["whh"].shape[1]
    NG = packed["bg"].shape[1]           # n_tasks * n_tasks
    NM = packed["b1"].shape[1]           # n_tasks * multi_units
    NO = packed["b2"].shape[1]           # n_tasks * output_dim
    O = NO // n_tasks

    if tile_b is None:
        tile_b = B if B <= 256 else 256
    assert B % tile_b == 0, "batch must be divisible by the batch tile"
    grid = (B // tile_b,)

    # time-major so each recurrence step reads one contiguous (tile_b, D) slab
    x_tm = jnp.transpose(x, (1, 0, 2)).astype(jnp.float32)

    def _const_spec(shape):
        nd = len(shape)
        return pl.BlockSpec(shape, lambda b, _nd=nd: (0,) * _nd)

    flops = (2 * B * T * (D * G4 + G * G4)
             + 2 * B * (n_tasks * U * NG + n_tasks * U * NM + NM * NO))
    transcendentals = B * T * 5 * G + B * NG + B * NO
    bytes_accessed = 4 * (int(x.size)
                          + sum(int(v.size) for v in packed.values())
                          + B * NO)

    kernel = functools.partial(_mmoe_kernel, n_tasks, U)
    out_packed = pl.pallas_call(
        kernel,
        out_shape=jax.ShapeDtypeStruct((B, NO), jnp.float32),
        grid=grid,
        in_specs=[
            pl.BlockSpec((T, tile_b, D), lambda b: (0, b, 0)),   # x: batch-tiled
            _const_spec((D, G4)),                                # weights stay
            _const_spec((G, G4)),                                #   resident in
            _const_spec((1, G4)),                                #   VMEM across
            _const_spec((n_tasks * U, NG)),                      #   grid steps
            _const_spec((1, NG)),
            _const_spec((n_tasks * U, NM)),
            _const_spec((1, NM)),
            _const_spec((NM, NO)),
            _const_spec((1, NO)),
        ],
        out_specs=pl.BlockSpec((tile_b, NO), lambda b: (b, 0)),
        compiler_params=pltpu.CompilerParams(
            dimension_semantics=("parallel",),     # v7x: shard batch over 2 TCs
            vmem_limit_bytes=32 * 1024 * 1024,     # safe on v7x's 64 MiB VMEM
        ),
        cost_estimate=pl.CostEstimate(
            flops=flops,
            transcendentals=transcendentals,
            bytes_accessed=bytes_accessed,
        ),
    )(x_tm, packed["wih"], packed["whh"], packed["bl"],
      packed["wg"], packed["bg"], packed["w1"], packed["b1"],
      packed["w2"], packed["b2"])

    # unpack the lane-packed per-task outputs (module returns a list of tensors)
    return [out_packed[:, i * O:(i + 1) * O] for i in range(n_tasks)]


# ---------------------------------------------------------------------------
# Parameter construction (PyTorch layouts) and constant-fold packing
# ---------------------------------------------------------------------------
def init_raw_params(key, input_dim, units, multi_units, output_dim, n_tasks):
    """Deterministic per-module parameters mirroring the PyTorch layout:
    Linear/LSTM weights stored as (out, in); LSTM gates ordered [i, f, g, o]."""
    U = units

    def lstm_params(k):
        k1, k2, k3, k4 = jax.random.split(k, 4)
        return dict(
            w_ih=0.1 * jax.random.normal(k1, (4 * U, input_dim), jnp.float32),
            w_hh=0.1 * jax.random.normal(k2, (4 * U, U), jnp.float32),
            b_ih=0.1 * jax.random.normal(k3, (4 * U,), jnp.float32),
            b_hh=0.1 * jax.random.normal(k4, (4 * U,), jnp.float32),
        )

    keys = list(jax.random.split(key, 4 * n_tasks))
    raw = dict(expert_lstm=[], gate_lstm=[], gate_lin=[], tower=[])
    for i in range(n_tasks):
        raw["expert_lstm"].append(lstm_params(keys[i]))
    for i in range(n_tasks):
        raw["gate_lstm"].append(lstm_params(keys[n_tasks + i]))
    for i in range(n_tasks):
        kg1, kg2 = jax.random.split(keys[2 * n_tasks + i])
        raw["gate_lin"].append(dict(
            w=0.1 * jax.random.normal(kg1, (n_tasks, U), jnp.float32),
            b=0.1 * jax.random.normal(kg2, (n_tasks,), jnp.float32),
        ))
    for i in range(n_tasks):
        kt = jax.random.split(keys[3 * n_tasks + i], 4)
        raw["tower"].append(dict(
            w1=0.1 * jax.random.normal(kt[0], (multi_units, U), jnp.float32),
            b1=0.1 * jax.random.normal(kt[1], (multi_units,), jnp.float32),
            w2=0.1 * jax.random.normal(kt[2], (output_dim, multi_units), jnp.float32),
            b2=0.1 * jax.random.normal(kt[3], (output_dim,), jnp.float32),
        ))
    return raw


def pack_params(raw, n_tasks, units):
    """Constant fold (amortized across calls): concatenate all LSTMs gate-grouped,
    block-diagonalize the recurrent / gate / tower weights."""
    U = units
    lstms = raw["expert_lstm"] + raw["gate_lstm"]    # experts first, then gates
    L = len(lstms)                                   # 2 * n_tasks
    D = lstms[0]["w_ih"].shape[1]
    G = L * U
    M = raw["tower"][0]["w1"].shape[0]
    O = raw["tower"][0]["w2"].shape[0]

    wih = jnp.zeros((D, 4 * G), jnp.float32)
    whh = jnp.zeros((G, 4 * G), jnp.float32)
    bl = jnp.zeros((1, 4 * G), jnp.float32)
    for k, p in enumerate(lstms):
        for t in range(4):                           # torch gate order [i,f,g,o]
            col = t * G + k * U
            wih = wih.at[:, col:col + U].set(p["w_ih"][t * U:(t + 1) * U, :].T)
            whh = whh.at[k * U:(k + 1) * U, col:col + U].set(
                p["w_hh"][t * U:(t + 1) * U, :].T)
            bl = bl.at[0, col:col + U].set(
                p["b_ih"][t * U:(t + 1) * U] + p["b_hh"][t * U:(t + 1) * U])

    wg = jnp.zeros((n_tasks * U, n_tasks * n_tasks), jnp.float32)
    bg = jnp.zeros((1, n_tasks * n_tasks), jnp.float32)
    w1 = jnp.zeros((n_tasks * U, n_tasks * M), jnp.float32)
    b1 = jnp.zeros((1, n_tasks * M), jnp.float32)
    w2 = jnp.zeros((n_tasks * M, n_tasks * O), jnp.float32)
    b2 = jnp.zeros((1, n_tasks * O), jnp.float32)
    for i in range(n_tasks):
        gl = raw["gate_lin"][i]
        tw = raw["tower"][i]
        wg = wg.at[i * U:(i + 1) * U, i * n_tasks:(i + 1) * n_tasks].set(gl["w"].T)
        bg = bg.at[0, i * n_tasks:(i + 1) * n_tasks].set(gl["b"])
        w1 = w1.at[i * U:(i + 1) * U, i * M:(i + 1) * M].set(tw["w1"].T)
        b1 = b1.at[0, i * M:(i + 1) * M].set(tw["b1"])
        w2 = w2.at[i * M:(i + 1) * M, i * O:(i + 1) * O].set(tw["w2"].T)
        b2 = b2.at[0, i * O:(i + 1) * O].set(tw["b2"])

    return dict(wih=wih, whh=whh, bl=bl, wg=wg, bg=bg,
                w1=w1, b1=b1, w2=w2, b2=b2)


# ---------------------------------------------------------------------------
# Pure-JAX reference (mirrors the PyTorch forward, unpacked weights)
# ---------------------------------------------------------------------------
def _lstm_last_h(x, p, units):
    U = units
    B, T, _ = x.shape
    h = jnp.zeros((B, U), jnp.float32)
    c = jnp.zeros((B, U), jnp.float32)
    for t in range(T):
        z = x[:, t, :] @ p["w_ih"].T + p["b_ih"] + h @ p["w_hh"].T + p["b_hh"]
        i = jax.nn.sigmoid(z[:, 0:U])
        f = jax.nn.sigmoid(z[:, U:2 * U])
        g = jnp.tanh(z[:, 2 * U:3 * U])
        o = jax.nn.sigmoid(z[:, 3 * U:4 * U])
        c = f * c + i * g
        h = o * jnp.tanh(c)
    return h


def reference_forward(x, raw, n_tasks, units):
    U = units
    expert_h = [_lstm_last_h(x, p, U) for p in raw["expert_lstm"]]
    outs = []
    for i in range(n_tasks):
        hg = _lstm_last_h(x, raw["gate_lstm"][i], U)
        logits = hg @ raw["gate_lin"][i]["w"].T + raw["gate_lin"][i]["b"]
        coef = jax.nn.softmax(logits, axis=1)
        mix = coef[:, 0:1] * expert_h[0]
        for e in range(1, n_tasks):
            mix = mix + coef[:, e:e + 1] * expert_h[e]
        tw = raw["tower"][i]
        h1 = mix @ tw["w1"].T + tw["b1"]
        h1 = jnp.where(h1 > 0, h1, 0.01 * h1)
        outs.append(jax.nn.sigmoid(h1 @ tw["w2"].T + tw["b2"]))
    return outs


# ---------------------------------------------------------------------------
if __name__ == "__main__":
    # Small shapes consistent with the module: batch=8, seq=8, input_dim=16,
    # n_tasks=2, units=16, multi_units=32, output_dim=8,
    # n_layers=1, num_dense_shared_layers=0, n_multi_layers=1.
    B, T, D = 8, 8, 16
    n_tasks, U, M, O = 2, 16, 32, 8

    key = jax.random.PRNGKey(0)
    kparams, kx = jax.random.split(key)
    raw = init_raw_params(kparams, D, U, M, O, n_tasks)
    packed = pack_params(raw, n_tasks, U)

    x = jax.random.normal(kx, (B, T, D), dtype=jnp.float32)

    outs = mmoe_forward(x, packed, n_tasks=n_tasks, units=U)
    outs = jax.block_until_ready(outs)

    with jax.default_matmul_precision("highest"):
        refs = reference_forward(x, raw, n_tasks, U)

    assert len(outs) == n_tasks
    for o_k, r_k in zip(outs, refs):
        assert o_k.shape == (B, O)
        err = float(jnp.max(jnp.abs(o_k - r_k)))
        assert jnp.allclose(o_k, r_k, atol=1e-3, rtol=1e-3), (
            "mismatch vs reference, max abs diff = %e" % err)

    print("KERNEL_OK")
</pallas_src>

<mosaic_0001>
module attributes {stable_mosaic.version = 11 : i64} {
  func.func @_mmoe_kernel(%arg0: i32, %arg1: memref<8x8x16xf32, #tpu.memory_space<vmem>>, %arg2: memref<16x256xf32, #tpu.memory_space<vmem>>, %arg3: memref<64x256xf32, #tpu.memory_space<vmem>>, %arg4: memref<1x256xf32, #tpu.memory_space<vmem>>, %arg5: memref<32x4xf32, #tpu.memory_space<vmem>>, %arg6: memref<1x4xf32, #tpu.memory_space<vmem>>, %arg7: memref<32x64xf32, #tpu.memory_space<vmem>>, %arg8: memref<1x64xf32, #tpu.memory_space<vmem>>, %arg9: memref<64x16xf32, #tpu.memory_space<vmem>>, %arg10: memref<1x16xf32, #tpu.memory_space<vmem>>, %arg11: memref<8x16xf32, #tpu.memory_space<vmem>>) attributes {dimension_semantics = [#tpu.dimension_semantics<parallel>], iteration_bounds = array<i64: 1>, scalar_prefetch = 0 : i64, scratch_operands = 0 : i64, tpu.core_type = #tpu.core_type<tc>, window_params = [{transform_indices = @transform_0, window_bounds = array<i64: 8, 8, 16>}, {pipeline_mode = #tpu.pipeline_mode<synchronous>, transform_indices = @transform_1, window_bounds = array<i64: 16, 256>}, {pipeline_mode = #tpu.pipeline_mode<synchronous>, transform_indices = @transform_2, window_bounds = array<i64: 64, 256>}, {pipeline_mode = #tpu.pipeline_mode<synchronous>, transform_indices = @transform_3, window_bounds = array<i64: 1, 256>}, {pipeline_mode = #tpu.pipeline_mode<synchronous>, transform_indices = @transform_4, window_bounds = array<i64: 32, 4>}, {pipeline_mode = #tpu.pipeline_mode<synchronous>, transform_indices = @transform_5, window_bounds = array<i64: 1, 4>}, {pipeline_mode = #tpu.pipeline_mode<synchronous>, transform_indices = @transform_6, window_bounds = array<i64: 32, 64>}, {pipeline_mode = #tpu.pipeline_mode<synchronous>, transform_indices = @transform_7, window_bounds = array<i64: 1, 64>}, {pipeline_mode = #tpu.pipeline_mode<synchronous>, transform_indices = @transform_8, window_bounds = array<i64: 64, 16>}, {pipeline_mode = #tpu.pipeline_mode<synchronous>, transform_indices = @transform_9, window_bounds = array<i64: 1, 16>}, {transform_indices = @transform_10, window_bounds = array<i64: 8, 16>}]} {
    %c0 = arith.constant 0 : index
    %c0_0 = arith.constant 0 : index
    %0 = vector.load %arg2[%c0, %c0_0] : memref<16x256xf32, #tpu.memory_space<vmem>>, vector<16x256xf32>
    %c0_1 = arith.constant 0 : index
    %c0_2 = arith.constant 0 : index
    %1 = vector.load %arg3[%c0_1, %c0_2] : memref<64x256xf32, #tpu.memory_space<vmem>>, vector<64x256xf32>
    %c0_3 = arith.constant 0 : index
    %c0_4 = arith.constant 0 : index
    %2 = vector.load %arg4[%c0_3, %c0_4] : memref<1x256xf32, #tpu.memory_space<vmem>>, vector<1x256xf32>
    %cst = arith.constant 0.000000e+00 : f32
    %3 = vector.broadcast %cst : f32 to vector<8x64xf32>
    %cst_5 = arith.constant 0.000000e+00 : f32
    %4 = vector.broadcast %cst_5 : f32 to vector<8x64xf32>
    %c0_i32 = arith.constant 0 : i32
    %5 = arith.index_cast %c0_i32 : i32 to index
    %c0_6 = arith.constant 0 : index
    %c0_7 = arith.constant 0 : index
    %6 = vector.load %arg1[%5, %c0_6, %c0_7] : memref<8x8x16xf32, #tpu.memory_space<vmem>>, vector<1x8x16xf32>
    %7 = vector.shape_cast %6 : vector<1x8x16xf32> to vector<8x16xf32>
    %cst_8 = arith.constant dense<0.000000e+00> : vector<8x256xf32>
    %8 = tpu.matmul %7, %0, %cst_8 {dimension_numbers = #tpu.dot_dimension_numbers<[1], [0], [0], [1], [0, 0, 1, 1], [], []>} : vector<8x16xf32>, vector<16x256xf32>, vector<8x256xf32> -> vector<8x256xf32>
    %cst_9 = arith.constant dense<0.000000e+00> : vector<8x256xf32>
    %9 = tpu.matmul %3, %1, %cst_9 {dimension_numbers = #tpu.dot_dimension_numbers<[1], [0], [0], [1], [0, 0, 1, 1], [], []>} : vector<8x64xf32>, vector<64x256xf32>, vector<8x256xf32> -> vector<8x256xf32>
    %10 = arith.addf %8, %9 : vector<8x256xf32>
    %11 = vector.broadcast %2 : vector<1x256xf32> to vector<8x256xf32>
    %12 = arith.addf %10, %11 : vector<8x256xf32>
    %13 = vector.extract_strided_slice %12 {offsets = [0, 0], sizes = [8, 64], strides = [1, 1]} : vector<8x256xf32> to vector<8x64xf32>
    %14 = arith.negf %13 : vector<8x64xf32>
    %15 = math.exp %14 : vector<8x64xf32>
    %cst_10 = arith.constant 1.000000e+00 : f32
    %16 = vector.broadcast %cst_10 : f32 to vector<8x64xf32>
    %17 = arith.addf %16, %15 : vector<8x64xf32>
    %18 = arith.divf %16, %17 : vector<8x64xf32>
    %19 = vector.extract_strided_slice %12 {offsets = [0, 64], sizes = [8, 64], strides = [1, 1]} : vector<8x256xf32> to vector<8x64xf32>
    %20 = arith.negf %19 : vector<8x64xf32>
    %21 = math.exp %20 : vector<8x64xf32>
    %cst_11 = arith.constant 1.000000e+00 : f32
    %22 = vector.broadcast %cst_11 : f32 to vector<8x64xf32>
    %23 = arith.addf %22, %21 : vector<8x64xf32>
    %24 = arith.divf %22, %23 : vector<8x64xf32>
    %25 = vector.extract_strided_slice %12 {offsets = [0, 128], sizes = [8, 64], strides = [1, 1]} : vector<8x256xf32> to vector<8x64xf32>
    %26 = math.tanh %25 : vector<8x64xf32>
    %27 = vector.extract_strided_slice %12 {offsets = [0, 192], sizes = [8, 64], strides = [1, 1]} : vector<8x256xf32> to vector<8x64xf32>
    %28 = arith.negf %27 : vector<8x64xf32>
    %29 = math.exp %28 : vector<8x64xf32>
    %cst_12 = arith.constant 1.000000e+00 : f32
    %30 = vector.broadcast %cst_12 : f32 to vector<8x64xf32>
    %31 = arith.addf %30, %29 : vector<8x64xf32>
    %32 = arith.divf %30, %31 : vector<8x64xf32>
    %33 = arith.mulf %24, %4 : vector<8x64xf32>
    %34 = arith.mulf %18, %26 : vector<8x64xf32>
    %35 = arith.addf %33, %34 : vector<8x64xf32>
    %36 = math.tanh %35 : vector<8x64xf32>
    %37 = arith.mulf %32, %36 : vector<8x64xf32>
    %c1_i32 = arith.constant 1 : i32
    %38 = arith.index_cast %c1_i32 : i32 to index
    %c0_13 = arith.constant 0 : index
    %c0_14 = arith.constant 0 : index
    %39 = vector.load %arg1[%38, %c0_13, %c0_14] : memref<8x8x16xf32, #tpu.memory_space<vmem>>, vector<1x8x16xf32>
    %40 = vector.shape_cast %39 : vector<1x8x16xf32> to vector<8x16xf32>
    %cst_15 = arith.constant dense<0.000000e+00> : vector<8x256xf32>
    %41 = tpu.matmul %40, %0, %cst_15 {dimension_numbers = #tpu.dot_dimension_numbers<[1], [0], [0], [1], [0, 0, 1, 1], [], []>} : vector<8x16xf32>, vector<16x256xf32>, vector<8x256xf32> -> vector<8x256xf32>
    %cst_16 = arith.constant dense<0.000000e+00> : vector<8x256xf32>
    %42 = tpu.matmul %37, %1, %cst_16 {dimension_numbers = #tpu.dot_dimension_numbers<[1], [0], [0], [1], [0, 0, 1, 1], [], []>} : vector<8x64xf32>, vector<64x256xf32>, vector<8x256xf32> -> vector<8x256xf32>
    %43 = arith.addf %41, %42 : vector<8x256xf32>
    %44 = vector.broadcast %2 : vector<1x256xf32> to vector<8x256xf32>
    %45 = arith.addf %43, %44 : vector<8x256xf32>
    %46 = vector.extract_strided_slice %45 {offsets = [0, 0], sizes = [8, 64], strides = [1, 1]} : vector<8x256xf32> to vector<8x64xf32>
    %47 = arith.negf %46 : vector<8x64xf32>
    %48 = math.exp %47 : vector<8x64xf32>
    %cst_17 = arith.constant 1.000000e+00 : f32
    %49 = vector.broadcast %cst_17 : f32 to vector<8x64xf32>
    %50 = arith.addf %49, %48 : vector<8x64xf32>
    %51 = arith.divf %49, %50 : vector<8x64xf32>
    %52 = vector.extract_strided_slice %45 {offsets = [0, 64], sizes = [8, 64], strides = [1, 1]} : vector<8x256xf32> to vector<8x64xf32>
    %53 = arith.negf %52 : vector<8x64xf32>
    %54 = math.exp %53 : vector<8x64xf32>
    %cst_18 = arith.constant 1.000000e+00 : f32
    %55 = vector.broadcast %cst_18 : f32 to vector<8x64xf32>
    %56 = arith.addf %55, %54 : vector<8x64xf32>
    %57 = arith.divf %55, %56 : vector<8x64xf32>
    %58 = vector.extract_strided_slice %45 {offsets = [0, 128], sizes = [8, 64], strides = [1, 1]} : vector<8x256xf32> to vector<8x64xf32>
    %59 = math.tanh %58 : vector<8x64xf32>
    %60 = vector.extract_strided_slice %45 {offsets = [0, 192], sizes = [8, 64], strides = [1, 1]} : vector<8x256xf32> to vector<8x64xf32>
    %61 = arith.negf %60 : vector<8x64xf32>
    %62 = math.exp %61 : vector<8x64xf32>
    %cst_19 = arith.constant 1.000000e+00 : f32
    %63 = vector.broadcast %cst_19 : f32 to vector<8x64xf32>
    %64 = arith.addf %63, %62 : vector<8x64xf32>
    %65 = arith.divf %63, %64 : vector<8x64xf32>
    %66 = arith.mulf %57, %35 : vector<8x64xf32>
    %67 = arith.mulf %51, %59 : vector<8x64xf32>
    %68 = arith.addf %66, %67 : vector<8x64xf32>
    %69 = math.tanh %68 : vector<8x64xf32>
    %70 = arith.mulf %65, %69 : vector<8x64xf32>
    %c2_i32 = arith.constant 2 : i32
    %71 = arith.index_cast %c2_i32 : i32 to index
    %c0_20 = arith.constant 0 : index
    %c0_21 = arith.constant 0 : index
    %72 = vector.load %arg1[%71, %c0_20, %c0_21] : memref<8x8x16xf32, #tpu.memory_space<vmem>>, vector<1x8x16xf32>
    %73 = vector.shape_cast %72 : vector<1x8x16xf32> to vector<8x16xf32>
    %cst_22 = arith.constant dense<0.000000e+00> : vector<8x256xf32>
    %74 = tpu.matmul %73, %0, %cst_22 {dimension_numbers = #tpu.dot_dimension_numbers<[1], [0], [0], [1], [0, 0, 1, 1], [], []>} : vector<8x16xf32>, vector<16x256xf32>, vector<8x256xf32> -> vector<8x256xf32>
    %cst_23 = arith.constant dense<0.000000e+00> : vector<8x256xf32>
    %75 = tpu.matmul %70, %1, %cst_23 {dimension_numbers = #tpu.dot_dimension_numbers<[1], [0], [0], [1], [0, 0, 1, 1], [], []>} : vector<8x64xf32>, vector<64x256xf32>, vector<8x256xf32> -> vector<8x256xf32>
    %76 = arith.addf %74, %75 : vector<8x256xf32>
    %77 = vector.broadcast %2 : vector<1x256xf32> to vector<8x256xf32>
    %78 = arith.addf %76, %77 : vector<8x256xf32>
    %79 = vector.extract_strided_slice %78 {offsets = [0, 0], sizes = [8, 64], strides = [1, 1]} : vector<8x256xf32> to vector<8x64xf32>
    %80 = arith.negf %79 : vector<8x64xf32>
    %81 = math.exp %80 : vector<8x64xf32>
    %cst_24 = arith.constant 1.000000e+00 : f32
    %82 = vector.broadcast %cst_24 : f32 to vector<8x64xf32>
    %83 = arith.addf %82, %81 : vector<8x64xf32>
    %84 = arith.divf %82, %83 : vector<8x64xf32>
    %85 = vector.extract_strided_slice %78 {offsets = [0, 64], sizes = [8, 64], strides = [1, 1]} : vector<8x256xf32> to vector<8x64xf32>
    %86 = arith.negf %85 : vector<8x64xf32>
    %87 = math.exp %86 : vector<8x64xf32>
    %cst_25 = arith.constant 1.000000e+00 : f32
    %88 = vector.broadcast %cst_25 : f32 to vector<8x64xf32>
    %89 = arith.addf %88, %87 : vector<8x64xf32>
    %90 = arith.divf %88, %89 : vector<8x64xf32>
    %91 = vector.extract_strided_slice %78 {offsets = [0, 128], sizes = [8, 64], strides = [1, 1]} : vector<8x256xf32> to vector<8x64xf32>
    %92 = math.tanh %91 : vector<8x64xf32>
    %93 = vector.extract_strided_slice %78 {offsets = [0, 192], sizes = [8, 64], strides = [1, 1]} : vector<8x256xf32> to vector<8x64xf32>
    %94 = arith.negf %93 : vector<8x64xf32>
    %95 = math.exp %94 : vector<8x64xf32>
    %cst_26 = arith.constant 1.000000e+00 : f32
    %96 = vector.broadcast %cst_26 : f32 to vector<8x64xf32>
    %97 = arith.addf %96, %95 : vector<8x64xf32>
    %98 = arith.divf %96, %97 : vector<8x64xf32>
    %99 = arith.mulf %90, %68 : vector<8x64xf32>
    %100 = arith.mulf %84, %92 : vector<8x64xf32>
    %101 = arith.addf %99, %100 : vector<8x64xf32>
    %102 = math.tanh %101 : vector<8x64xf32>
    %103 = arith.mulf %98, %102 : vector<8x64xf32>
    %c3_i32 = arith.constant 3 : i32
    %104 = arith.index_cast %c3_i32 : i32 to index
    %c0_27 = arith.constant 0 : index
    %c0_28 = arith.constant 0 : index
    %105 = vector.load %arg1[%104, %c0_27, %c0_28] : memref<8x8x16xf32, #tpu.memory_space<vmem>>, vector<1x8x16xf32>
    %106 = vector.shape_cast %105 : vector<1x8x16xf32> to vector<8x16xf32>
    %cst_29 = arith.constant dense<0.000000e+00> : vector<8x256xf32>
    %107 = tpu.matmul %106, %0, %cst_29 {dimension_numbers = #tpu.dot_dimension_numbers<[1], [0], [0], [1], [0, 0, 1, 1], [], []>} : vector<8x16xf32>, vector<16x256xf32>, vector<8x256xf32> -> vector<8x256xf32>
    %cst_30 = arith.constant dense<0.000000e+00> : vector<8x256xf32>
    %108 = tpu.matmul %103, %1, %cst_30 {dimension_numbers = #tpu.dot_dimension_numbers<[1], [0], [0], [1], [0, 0, 1, 1], [], []>} : vector<8x64xf32>, vector<64x256xf32>, vector<8x256xf32> -> vector<8x256xf32>
    %109 = arith.addf %107, %108 : vector<8x256xf32>
    %110 = vector.broadcast %2 : vector<1x256xf32> to vector<8x256xf32>
    %111 = arith.addf %109, %110 : vector<8x256xf32>
    %112 = vector.extract_strided_slice %111 {offsets = [0, 0], sizes = [8, 64], strides = [1, 1]} : vector<8x256xf32> to vector<8x64xf32>
    %113 = arith.negf %112 : vector<8x64xf32>
    %114 = math.exp %113 : vector<8x64xf32>
    %cst_31 = arith.constant 1.000000e+00 : f32
    %115 = vector.broadcast %cst_31 : f32 to vector<8x64xf32>
    %116 = arith.addf %115, %114 : vector<8x64xf32>
    %117 = arith.divf %115, %116 : vector<8x64xf32>
    %118 = vector.extract_strided_slice %111 {offsets = [0, 64], sizes = [8, 64], strides = [1, 1]} : vector<8x256xf32> to vector<8x64xf32>
    %119 = arith.negf %118 : vector<8x64xf32>
    %120 = math.exp %119 : vector<8x64xf32>
    %cst_32 = arith.constant 1.000000e+00 : f32
    %121 = vector.broadcast %cst_32 : f32 to vector<8x64xf32>
    %122 = arith.addf %121, %120 : vector<8x64xf32>
    %123 = arith.divf %121, %122 : vector<8x64xf32>
    %124 = vector.extract_strided_slice %111 {offsets = [0, 128], sizes = [8, 64], strides = [1, 1]} : vector<8x256xf32> to vector<8x64xf32>
    %125 = math.tanh %124 : vector<8x64xf32>
    %126 = vector.extract_strided_slice %111 {offsets = [0, 192], sizes = [8, 64], strides = [1, 1]} : vector<8x256xf32> to vector<8x64xf32>
    %127 = arith.negf %126 : vector<8x64xf32>
    %128 = math.exp %127 : vector<8x64xf32>
    %cst_33 = arith.constant 1.000000e+00 : f32
    %129 = vector.broadcast %cst_33 : f32 to vector<8x64xf32>
    %130 = arith.addf %129, %128 : vector<8x64xf32>
    %131 = arith.divf %129, %130 : vector<8x64xf32>
    %132 = arith.mulf %123, %101 : vector<8x64xf32>
    %133 = arith.mulf %117, %125 : vector<8x64xf32>
    %134 = arith.addf %132, %133 : vector<8x64xf32>
    %135 = math.tanh %134 : vector<8x64xf32>
    %136 = arith.mulf %131, %135 : vector<8x64xf32>
    %c4_i32 = arith.constant 4 : i32
    %137 = arith.index_cast %c4_i32 : i32 to index
    %c0_34 = arith.constant 0 : index
    %c0_35 = arith.constant 0 : index
    %138 = vector.load %arg1[%137, %c0_34, %c0_35] : memref<8x8x16xf32, #tpu.memory_space<vmem>>, vector<1x8x16xf32>
    %139 = vector.shape_cast %138 : vector<1x8x16xf32> to vector<8x16xf32>
    %cst_36 = arith.constant dense<0.000000e+00> : vector<8x256xf32>
    %140 = tpu.matmul %139, %0, %cst_36 {dimension_numbers = #tpu.dot_dimension_numbers<[1], [0], [0], [1], [0, 0, 1, 1], [], []>} : vector<8x16xf32>, vector<16x256xf32>, vector<8x256xf32> -> vector<8x256xf32>
    %cst_37 = arith.constant dense<0.000000e+00> : vector<8x256xf32>
    %141 = tpu.matmul %136, %1, %cst_37 {dimension_numbers = #tpu.dot_dimension_numbers<[1], [0], [0], [1], [0, 0, 1, 1], [], []>} : vector<8x64xf32>, vector<64x256xf32>, vector<8x256xf32> -> vector<8x256xf32>
    %142 = arith.addf %140, %141 : vector<8x256xf32>
    %143 = vector.broadcast %2 : vector<1x256xf32> to vector<8x256xf32>
    %144 = arith.addf %142, %143 : vector<8x256xf32>
    %145 = vector.extract_strided_slice %144 {offsets = [0, 0], sizes = [8, 64], strides = [1, 1]} : vector<8x256xf32> to vector<8x64xf32>
    %146 = arith.negf %145 : vector<8x64xf32>
    %147 = math.exp %146 : vector<8x64xf32>
    %cst_38 = arith.constant 1.000000e+00 : f32
    %148 = vector.broadcast %cst_38 : f32 to vector<8x64xf32>
    %149 = arith.addf %148, %147 : vector<8x64xf32>
    %150 = arith.divf %148, %149 : vector<8x64xf32>
    %151 = vector.extract_strided_slice %144 {offsets = [0, 64], sizes = [8, 64], strides = [1, 1]} : vector<8x256xf32> to vector<8x64xf32>
    %152 = arith.negf %151 : vector<8x64xf32>
    %153 = math.exp %152 : vector<8x64xf32>
    %cst_39 = arith.constant 1.000000e+00 : f32
    %154 = vector.broadcast %cst_39 : f32 to vector<8x64xf32>
    %155 = arith.addf %154, %153 : vector<8x64xf32>
    %156 = arith.divf %154, %155 : vector<8x64xf32>
    %157 = vector.extract_strided_slice %144 {offsets = [0, 128], sizes = [8, 64], strides = [1, 1]} : vector<8x256xf32> to vector<8x64xf32>
    %158 = math.tanh %157 : vector<8x64xf32>
    %159 = vector.extract_strided_slice %144 {offsets = [0, 192], sizes = [8, 64], strides = [1, 1]} : vector<8x256xf32> to vector<8x64xf32>
    %160 = arith.negf %159 : vector<8x64xf32>
    %161 = math.exp %160 : vector<8x64xf32>
    %cst_40 = arith.constant 1.000000e+00 : f32
    %162 = vector.broadcast %cst_40 : f32 to vector<8x64xf32>
    %163 = arith.addf %162, %161 : vector<8x64xf32>
    %164 = arith.divf %162, %163 : vector<8x64xf32>
    %165 = arith.mulf %156, %134 : vector<8x64xf32>
    %166 = arith.mulf %150, %158 : vector<8x64xf32>
    %167 = arith.addf %165, %166 : vector<8x64xf32>
    %168 = math.tanh %167 : vector<8x64xf32>
    %169 = arith.mulf %164, %168 : vector<8x64xf32>
    %c5_i32 = arith.constant 5 : i32
    %170 = arith.index_cast %c5_i32 : i32 to index
    %c0_41 = arith.constant 0 : index
    %c0_42 = arith.constant 0 : index
    %171 = vector.load %arg1[%170, %c0_41, %c0_42] : memref<8x8x16xf32, #tpu.memory_space<vmem>>, vector<1x8x16xf32>
    %172 = vector.shape_cast %171 : vector<1x8x16xf32> to vector<8x16xf32>
    %cst_43 = arith.constant dense<0.000000e+00> : vector<8x256xf32>
    %173 = tpu.matmul %172, %0, %cst_43 {dimension_numbers = #tpu.dot_dimension_numbers<[1], [0], [0], [1], [0, 0, 1, 1], [], []>} : vector<8x16xf32>, vector<16x256xf32>, vector<8x256xf32> -> vector<8x256xf32>
    %cst_44 = arith.constant dense<0.000000e+00> : vector<8x256xf32>
    %174 = tpu.matmul %169, %1, %cst_44 {dimension_numbers = #tpu.dot_dimension_numbers<[1], [0], [0], [1], [0, 0, 1, 1], [], []>} : vector<8x64xf32>, vector<64x256xf32>, vector<8x256xf32> -> vector<8x256xf32>
    %175 = arith.addf %173, %174 : vector<8x256xf32>
    %176 = vector.broadcast %2 : vector<1x256xf32> to vector<8x256xf32>
    %177 = arith.addf %175, %176 : vector<8x256xf32>
    %178 = vector.extract_strided_slice %177 {offsets = [0, 0], sizes = [8, 64], strides = [1, 1]} : vector<8x256xf32> to vector<8x64xf32>
    %179 = arith.negf %178 : vector<8x64xf32>
    %180 = math.exp %179 : vector<8x64xf32>
    %cst_45 = arith.constant 1.000000e+00 : f32
    %181 = vector.broadcast %cst_45 : f32 to vector<8x64xf32>
    %182 = arith.addf %181, %180 : vector<8x64xf32>
    %183 = arith.divf %181, %182 : vector<8x64xf32>
    %184 = vector.extract_strided_slice %177 {offsets = [0, 64], sizes = [8, 64], strides = [1, 1]} : vector<8x256xf32> to vector<8x64xf32>
    %185 = arith.negf %184 : vector<8x64xf32>
    %186 = math.exp %185 : vector<8x64xf32>
    %cst_46 = arith.constant 1.000000e+00 : f32
    %187 = vector.broadcast %cst_46 : f32 to vector<8x64xf32>
    %188 = arith.addf %187, %186 : vector<8x64xf32>
    %189 = arith.divf %187, %188 : vector<8x64xf32>
    %190 = vector.extract_strided_slice %177 {offsets = [0, 128], sizes = [8, 64], strides = [1, 1]} : vector<8x256xf32> to vector<8x64xf32>
    %191 = math.tanh %190 : vector<8x64xf32>
    %192 = vector.extract_strided_slice %177 {offsets = [0, 192], sizes = [8, 64], strides = [1, 1]} : vector<8x256xf32> to vector<8x64xf32>
    %193 = arith.negf %192 : vector<8x64xf32>
    %194 = math.exp %193 : vector<8x64xf32>
    %cst_47 = arith.constant 1.000000e+00 : f32
    %195 = vector.broadcast %cst_47 : f32 to vector<8x64xf32>
    %196 = arith.addf %195, %194 : vector<8x64xf32>
    %197 = arith.divf %195, %196 : vector<8x64xf32>
    %198 = arith.mulf %189, %167 : vector<8x64xf32>
    %199 = arith.mulf %183, %191 : vector<8x64xf32>
    %200 = arith.addf %198, %199 : vector<8x64xf32>
    %201 = math.tanh %200 : vector<8x64xf32>
    %202 = arith.mulf %197, %201 : vector<8x64xf32>
    %c6_i32 = arith.constant 6 : i32
    %203 = arith.index_cast %c6_i32 : i32 to index
    %c0_48 = arith.constant 0 : index
    %c0_49 = arith.constant 0 : index
    %204 = vector.load %arg1[%203, %c0_48, %c0_49] : memref<8x8x16xf32, #tpu.memory_space<vmem>>, vector<1x8x16xf32>
    %205 = vector.shape_cast %204 : vector<1x8x16xf32> to vector<8x16xf32>
    %cst_50 = arith.constant dense<0.000000e+00> : vector<8x256xf32>
    %206 = tpu.matmul %205, %0, %cst_50 {dimension_numbers = #tpu.dot_dimension_numbers<[1], [0], [0], [1], [0, 0, 1, 1], [], []>} : vector<8x16xf32>, vector<16x256xf32>, vector<8x256xf32> -> vector<8x256xf32>
    %cst_51 = arith.constant dense<0.000000e+00> : vector<8x256xf32>
    %207 = tpu.matmul %202, %1, %cst_51 {dimension_numbers = #tpu.dot_dimension_numbers<[1], [0], [0], [1], [0, 0, 1, 1], [], []>} : vector<8x64xf32>, vector<64x256xf32>, vector<8x256xf32> -> vector<8x256xf32>
    %208 = arith.addf %206, %207 : vector<8x256xf32>
    %209 = vector.broadcast %2 : vector<1x256xf32> to vector<8x256xf32>
    %210 = arith.addf %208, %209 : vector<8x256xf32>
    %211 = vector.extract_strided_slice %210 {offsets = [0, 0], sizes = [8, 64], strides = [1, 1]} : vector<8x256xf32> to vector<8x64xf32>
    %212 = arith.negf %211 : vector<8x64xf32>
    %213 = math.exp %212 : vector<8x64xf32>
    %cst_52 = arith.constant 1.000000e+00 : f32
    %214 = vector.broadcast %cst_52 : f32 to vector<8x64xf32>
    %215 = arith.addf %214, %213 : vector<8x64xf32>
    %216 = arith.divf %214, %215 : vector<8x64xf32>
    %217 = vector.extract_strided_slice %210 {offsets = [0, 64], sizes = [8, 64], strides = [1, 1]} : vector<8x256xf32> to vector<8x64xf32>
    %218 = arith.negf %217 : vector<8x64xf32>
    %219 = math.exp %218 : vector<8x64xf32>
    %cst_53 = arith.constant 1.000000e+00 : f32
    %220 = vector.broadcast %cst_53 : f32 to vector<8x64xf32>
    %221 = arith.addf %220, %219 : vector<8x64xf32>
    %222 = arith.divf %220, %221 : vector<8x64xf32>
    %223 = vector.extract_strided_slice %210 {offsets = [0, 128], sizes = [8, 64], strides = [1, 1]} : vector<8x256xf32> to vector<8x64xf32>
    %224 = math.tanh %223 : vector<8x64xf32>
    %225 = vector.extract_strided_slice %210 {offsets = [0, 192], sizes = [8, 64], strides = [1, 1]} : vector<8x256xf32> to vector<8x64xf32>
    %226 = arith.negf %225 : vector<8x64xf32>
    %227 = math.exp %226 : vector<8x64xf32>
    %cst_54 = arith.constant 1.000000e+00 : f32
    %228 = vector.broadcast %cst_54 : f32 to vector<8x64xf32>
    %229 = arith.addf %228, %227 : vector<8x64xf32>
    %230 = arith.divf %228, %229 : vector<8x64xf32>
    %231 = arith.mulf %222, %200 : vector<8x64xf32>
    %232 = arith.mulf %216, %224 : vector<8x64xf32>
    %233 = arith.addf %231, %232 : vector<8x64xf32>
    %234 = math.tanh %233 : vector<8x64xf32>
    %235 = arith.mulf %230, %234 : vector<8x64xf32>
    %c7_i32 = arith.constant 7 : i32
    %236 = arith.index_cast %c7_i32 : i32 to index
    %c0_55 = arith.constant 0 : index
    %c0_56 = arith.constant 0 : index
    %237 = vector.load %arg1[%236, %c0_55, %c0_56] : memref<8x8x16xf32, #tpu.memory_space<vmem>>, vector<1x8x16xf32>
    %238 = vector.shape_cast %237 : vector<1x8x16xf32> to vector<8x16xf32>
    %cst_57 = arith.constant dense<0.000000e+00> : vector<8x256xf32>
    %239 = tpu.matmul %238, %0, %cst_57 {dimension_numbers = #tpu.dot_dimension_numbers<[1], [0], [0], [1], [0, 0, 1, 1], [], []>} : vector<8x16xf32>, vector<16x256xf32>, vector<8x256xf32> -> vector<8x256xf32>
    %cst_58 = arith.constant dense<0.000000e+00> : vector<8x256xf32>
    %240 = tpu.matmul %235, %1, %cst_58 {dimension_numbers = #tpu.dot_dimension_numbers<[1], [0], [0], [1], [0, 0, 1, 1], [], []>} : vector<8x64xf32>, vector<64x256xf32>, vector<8x256xf32> -> vector<8x256xf32>
    %241 = arith.addf %239, %240 : vector<8x256xf32>
    %242 = vector.broadcast %2 : vector<1x256xf32> to vector<8x256xf32>
    %243 = arith.addf %241, %242 : vector<8x256xf32>
    %244 = vector.extract_strided_slice %243 {offsets = [0, 0], sizes = [8, 64], strides = [1, 1]} : vector<8x256xf32> to vector<8x64xf32>
    %245 = arith.negf %244 : vector<8x64xf32>
    %246 = math.exp %245 : vector<8x64xf32>
    %cst_59 = arith.constant 1.000000e+00 : f32
    %247 = vector.broadcast %cst_59 : f32 to vector<8x64xf32>
    %248 = arith.addf %247, %246 : vector<8x64xf32>
    %249 = arith.divf %247, %248 : vector<8x64xf32>
    %250 = vector.extract_strided_slice %243 {offsets = [0, 64], sizes = [8, 64], strides = [1, 1]} : vector<8x256xf32> to vector<8x64xf32>
    %251 = arith.negf %250 : vector<8x64xf32>
    %252 = math.exp %251 : vector<8x64xf32>
    %cst_60 = arith.constant 1.000000e+00 : f32
    %253 = vector.broadcast %cst_60 : f32 to vector<8x64xf32>
    %254 = arith.addf %253, %252 : vector<8x64xf32>
    %255 = arith.divf %253, %254 : vector<8x64xf32>
    %256 = vector.extract_strided_slice %243 {offsets = [0, 128], sizes = [8, 64], strides = [1, 1]} : vector<8x256xf32> to vector<8x64xf32>
    %257 = math.tanh %256 : vector<8x64xf32>
    %258 = vector.extract_strided_slice %243 {offsets = [0, 192], sizes = [8, 64], strides = [1, 1]} : vector<8x256xf32> to vector<8x64xf32>
    %259 = arith.negf %258 : vector<8x64xf32>
    %260 = math.exp %259 : vector<8x64xf32>
    %cst_61 = arith.constant 1.000000e+00 : f32
    %261 = vector.broadcast %cst_61 : f32 to vector<8x64xf32>
    %262 = arith.addf %261, %260 : vector<8x64xf32>
    %263 = arith.divf %261, %262 : vector<8x64xf32>
    %264 = arith.mulf %255, %233 : vector<8x64xf32>
    %265 = arith.mulf %249, %257 : vector<8x64xf32>
    %266 = arith.addf %264, %265 : vector<8x64xf32>
    %267 = math.tanh %266 : vector<8x64xf32>
    %268 = arith.mulf %263, %267 : vector<8x64xf32>
    %c8_i32 = arith.constant 8 : i32
    %269 = vector.extract_strided_slice %268 {offsets = [0, 0], sizes = [8, 32], strides = [1, 1]} : vector<8x64xf32> to vector<8x32xf32>
    %270 = vector.extract_strided_slice %268 {offsets = [0, 32], sizes = [8, 32], strides = [1, 1]} : vector<8x64xf32> to vector<8x32xf32>
    %c0_62 = arith.constant 0 : index
    %c0_63 = arith.constant 0 : index
    %271 = vector.load %arg5[%c0_62, %c0_63] : memref<32x4xf32, #tpu.memory_space<vmem>>, vector<32x4xf32>
    %cst_64 = arith.constant dense<0.000000e+00> : vector<8x4xf32>
    %272 = tpu.matmul %270, %271, %cst_64 {dimension_numbers = #tpu.dot_dimension_numbers<[1], [0], [0], [1], [0, 0, 1, 1], [], []>} : vector<8x32xf32>, vector<32x4xf32>, vector<8x4xf32> -> vector<8x4xf32>
    %c0_65 = arith.constant 0 : index
    %c0_66 = arith.constant 0 : index
    %273 = vector.load %arg6[%c0_65, %c0_66] : memref<1x4xf32, #tpu.memory_space<vmem>>, vector<1x4xf32>
    %274 = vector.broadcast %273 : vector<1x4xf32> to vector<8x4xf32>
    %275 = arith.addf %272, %274 : vector<8x4xf32>
    %276 = vector.extract_strided_slice %275 {offsets = [0, 0], sizes = [8, 2], strides = [1, 1]} : vector<8x4xf32> to vector<8x2xf32>
    %cst_67 = arith.constant dense<0xFF800000> : vector<8xf32>
    %277 = vector.multi_reduction <maximumf>, %276, %cst_67 [1] : vector<8x2xf32> to vector<8xf32>
    %278 = vector.shape_cast %277 : vector<8xf32> to vector<8x1xf32>
    %279 = vector.broadcast %278 : vector<8x1xf32> to vector<8x2xf32>
    %280 = arith.subf %276, %279 : vector<8x2xf32>
    %281 = math.exp %280 : vector<8x2xf32>
    %cst_68 = arith.constant dense<0.000000e+00> : vector<8xf32>
    %282 = vector.multi_reduction <add>, %281, %cst_68 [1] : vector<8x2xf32> to vector<8xf32>
    %283 = vector.shape_cast %282 : vector<8xf32> to vector<8x1xf32>
    %284 = vector.broadcast %283 : vector<8x1xf32> to vector<8x2xf32>
    %285 = arith.divf %281, %284 : vector<8x2xf32>
    %286 = vector.extract_strided_slice %285 {offsets = [0, 0], sizes = [8, 1], strides = [1, 1]} : vector<8x2xf32> to vector<8x1xf32>
    %287 = vector.extract_strided_slice %269 {offsets = [0, 0], sizes = [8, 16], strides = [1, 1]} : vector<8x32xf32> to vector<8x16xf32>
    %288 = vector.broadcast %286 : vector<8x1xf32> to vector<8x16xf32>
    %289 = arith.mulf %288, %287 : vector<8x16xf32>
    %290 = vector.extract_strided_slice %285 {offsets = [0, 1], sizes = [8, 1], strides = [1, 1]} : vector<8x2xf32> to vector<8x1xf32>
    %291 = vector.extract_strided_slice %269 {offsets = [0, 16], sizes = [8, 16], strides = [1, 1]} : vector<8x32xf32> to vector<8x16xf32>
    %292 = vector.broadcast %290 : vector<8x1xf32> to vector<8x16xf32>
    %293 = arith.mulf %292, %291 : vector<8x16xf32>
    %294 = arith.addf %289, %293 : vector<8x16xf32>
    %295 = vector.extract_strided_slice %275 {offsets = [0, 2], sizes = [8, 2], strides = [1, 1]} : vector<8x4xf32> to vector<8x2xf32>
    %cst_69 = arith.constant dense<0xFF800000> : vector<8xf32>
    %296 = vector.multi_reduction <maximumf>, %295, %cst_69 [1] : vector<8x2xf32> to vector<8xf32>
    %297 = vector.shape_cast %296 : vector<8xf32> to vector<8x1xf32>
    %298 = vector.broadcast %297 : vector<8x1xf32> to vector<8x2xf32>
    %299 = arith.subf %295, %298 : vector<8x2xf32>
    %300 = math.exp %299 : vector<8x2xf32>
    %cst_70 = arith.constant dense<0.000000e+00> : vector<8xf32>
    %301 = vector.multi_reduction <add>, %300, %cst_70 [1] : vector<8x2xf32> to vector<8xf32>
    %302 = vector.shape_cast %301 : vector<8xf32> to vector<8x1xf32>
    %303 = vector.broadcast %302 : vector<8x1xf32> to vector<8x2xf32>
    %304 = arith.divf %300, %303 : vector<8x2xf32>
    %305 = vector.extract_strided_slice %304 {offsets = [0, 0], sizes = [8, 1], strides = [1, 1]} : vector<8x2xf32> to vector<8x1xf32>
    %306 = vector.extract_strided_slice %269 {offsets = [0, 0], sizes = [8, 16], strides = [1, 1]} : vector<8x32xf32> to vector<8x16xf32>
    %307 = vector.broadcast %305 : vector<8x1xf32> to vector<8x16xf32>
    %308 = arith.mulf %307, %306 : vector<8x16xf32>
    %309 = vector.extract_strided_slice %304 {offsets = [0, 1], sizes = [8, 1], strides = [1, 1]} : vector<8x2xf32> to vector<8x1xf32>
    %310 = vector.extract_strided_slice %269 {offsets = [0, 16], sizes = [8, 16], strides = [1, 1]} : vector<8x32xf32> to vector<8x16xf32>
    %311 = vector.broadcast %309 : vector<8x1xf32> to vector<8x16xf32>
    %312 = arith.mulf %311, %310 : vector<8x16xf32>
    %313 = arith.addf %308, %312 : vector<8x16xf32>
    %314 = tpu.concatenate %294, %313 in 1 : vector<8x16xf32>, vector<8x16xf32> -> vector<8x32xf32>
    %c0_71 = arith.constant 0 : index
    %c0_72 = arith.constant 0 : index
    %315 = vector.load %arg7[%c0_71, %c0_72] : memref<32x64xf32, #tpu.memory_space<vmem>>, vector<32x64xf32>
    %cst_73 = arith.constant dense<0.000000e+00> : vector<8x64xf32>
    %316 = tpu.matmul %314, %315, %cst_73 {dimension_numbers = #tpu.dot_dimension_numbers<[1], [0], [0], [1], [0, 0, 1, 1], [], []>} : vector<8x32xf32>, vector<32x64xf32>, vector<8x64xf32> -> vector<8x64xf32>
    %c0_74 = arith.constant 0 : index
    %c0_75 = arith.constant 0 : index
    %317 = vector.load %arg8[%c0_74, %c0_75] : memref<1x64xf32, #tpu.memory_space<vmem>>, vector<1x64xf32>
    %318 = vector.broadcast %317 : vector<1x64xf32> to vector<8x64xf32>
    %319 = arith.addf %316, %318 : vector<8x64xf32>
    %cst_76 = arith.constant 0.000000e+00 : f32
    %320 = vector.broadcast %cst_76 : f32 to vector<8x64xf32>
    %321 = arith.cmpf ogt, %319, %320 : vector<8x64xf32>
    %cst_77 = arith.constant 0.00999999977 : f32
    %322 = vector.broadcast %cst_77 : f32 to vector<8x64xf32>
    %323 = arith.mulf %322, %319 : vector<8x64xf32>
    %324 = arith.select %321, %319, %323 : vector<8x64xi1>, vector<8x64xf32>
    %c0_78 = arith.constant 0 : index
    %c0_79 = arith.constant 0 : index
    %325 = vector.load %arg9[%c0_78, %c0_79] : memref<64x16xf32, #tpu.memory_space<vmem>>, vector<64x16xf32>
    %cst_80 = arith.constant dense<0.000000e+00> : vector<8x16xf32>
    %326 = tpu.matmul %324, %325, %cst_80 {dimension_numbers = #tpu.dot_dimension_numbers<[1], [0], [0], [1], [0, 0, 1, 1], [], []>} : vector<8x64xf32>, vector<64x16xf32>, vector<8x16xf32> -> vector<8x16xf32>
    %c0_81 = arith.constant 0 : index
    %c0_82 = arith.constant 0 : index
    %327 = vector.load %arg10[%c0_81, %c0_82] : memref<1x16xf32, #tpu.memory_space<vmem>>, vector<1x16xf32>
    %328 = vector.broadcast %327 : vector<1x16xf32> to vector<8x16xf32>
    %329 = arith.addf %326, %328 : vector<8x16xf32>
    %330 = arith.negf %329 : vector<8x16xf32>
    %331 = math.exp %330 : vector<8x16xf32>
    %cst_83 = arith.constant 1.000000e+00 : f32
    %332 = vector.broadcast %cst_83 : f32 to vector<8x16xf32>
    %333 = arith.addf %332, %331 : vector<8x16xf32>
    %334 = arith.divf %332, %333 : vector<8x16xf32>
    %c0_84 = arith.constant 0 : index
    %c0_85 = arith.constant 0 : index
    %335 = vector.load %arg11[%c0_84, %c0_85] : memref<8x16xf32, #tpu.memory_space<vmem>>, vector<8x16xf32>
    tpu.vector_store %arg11[%c0_84, %c0_85], %334 {strides = array<i32>} : memref<8x16xf32, #tpu.memory_space<vmem>>, vector<8x16xf32>,
    return
  }
  func.func @transform_0(%arg0: i32) -> (i32, i32, i32) {
    %c0_i32 = arith.constant 0 : i32
    %c0_i32_0 = arith.constant 0 : i32
    %c0_i32_1 = arith.constant 0 : i32
    return %c0_i32, %arg0, %c0_i32_0 : i32, i32, i32
  }
  func.func @transform_1(%arg0: i32) -> (i32, i32) {
    %c0_i32 = arith.constant 0 : i32
    %c0_i32_0 = arith.constant 0 : i32
    %c0_i32_1 = arith.constant 0 : i32
    return %c0_i32, %c0_i32_0 : i32, i32
  }
  func.func @transform_2(%arg0: i32) -> (i32, i32) {
    %c0_i32 = arith.constant 0 : i32
    %c0_i32_0 = arith.constant 0 : i32
    %c0_i32_1 = arith.constant 0 : i32
    return %c0_i32, %c0_i32_0 : i32, i32
  }
  func.func @transform_3(%arg0: i32) -> (i32, i32) {
    %c0_i32 = arith.constant 0 : i32
    %c0_i32_0 = arith.constant 0 : i32
    %c0_i32_1 = arith.constant 0 : i32
    return %c0_i32, %c0_i32_0 : i32, i32
  }
  func.func @transform_4(%arg0: i32) -> (i32, i32) {
    %c0_i32 = arith.constant 0 : i32
    %c0_i32_0 = arith.constant 0 : i32
    %c0_i32_1 = arith.constant 0 : i32
    return %c0_i32, %c0_i32_0 : i32, i32
  }
  func.func @transform_5(%arg0: i32) -> (i32, i32) {
    %c0_i32 = arith.constant 0 : i32
    %c0_i32_0 = arith.constant 0 : i32
    %c0_i32_1 = arith.constant 0 : i32
    return %c0_i32, %c0_i32_0 : i32, i32
  }
  func.func @transform_6(%arg0: i32) -> (i32, i32) {
    %c0_i32 = arith.constant 0 : i32
    %c0_i32_0 = arith.constant 0 : i32
    %c0_i32_1 = arith.constant 0 : i32
    return %c0_i32, %c0_i32_0 : i32, i32
  }
  func.func @transform_7(%arg0: i32) -> (i32, i32) {
    %c0_i32 = arith.constant 0 : i32
    %c0_i32_0 = arith.constant 0 : i32
    %c0_i32_1 = arith.constant 0 : i32
    return %c0_i32, %c0_i32_0 : i32, i32
  }
  func.func @transform_8(%arg0: i32) -> (i32, i32) {
    %c0_i32 = arith.constant 0 : i32
    %c0_i32_0 = arith.constant 0 : i32
    %c0_i32_1 = arith.constant 0 : i32
    return %c0_i32, %c0_i32_0 : i32, i32
  }
  func.func @transform_9(%arg0: i32) -> (i32, i32) {
    %c0_i32 = arith.constant 0 : i32
    %c0_i32_0 = arith.constant 0 : i32
    %c0_i32_1 = arith.constant 0 : i32
    return %c0_i32, %c0_i32_0 : i32, i32
  }
  func.func @transform_10(%arg0: i32) -> (i32, i32) {
    %c0_i32 = arith.constant 0 : i32
    %c0_i32_0 = arith.constant 0 : i32
    return %arg0, %c0_i32 : i32, i32
  }
}

</mosaic_0001>

<llo_original>
// kernel: tpu_custom_call.1
$region0: #{tpu_custom_call.1}
  #allocation0 [shape = 'u32[]', space=smem, size = 0x4, offset = 0x4, fixed_abs, tag = 'smem constant byte address 0x4 - core index']
  #allocation1 [shape = 'u32[144,128]{1,0:T(1,128)}', space=vmem, size = 0x12000, scoped, tag = 'internal scratch']
  %s0 = inlined_call_operand.vmem [shape: f32[8,8,16], index: 0, kind: input, shape index: {}]
  %s1 = inlined_call_operand.vmem [shape: f32[16,256], index: 1, kind: input, shape index: {}]
  %s2 = inlined_call_operand.hbm [shape: f32[64,256], index: 2, kind: input, shape index: {}]
  %s3 = inlined_call_operand.vmem [shape: f32[1,256], index: 3, kind: input, shape index: {}]
  %s4 = inlined_call_operand.vmem [shape: f32[32,4], index: 4, kind: input, shape index: {}]
  %s5 = inlined_call_operand.hbm [shape: f32[1,4], index: 5, kind: input, shape index: {}]
  %s6 = inlined_call_operand.vmem [shape: f32[32,64], index: 6, kind: input, shape index: {}]
  %s7 = inlined_call_operand.hbm [shape: f32[1,64], index: 7, kind: input, shape index: {}]
  %s8 = inlined_call_operand.vmem [shape: f32[64,16], index: 8, kind: input, shape index: {}]
  %s9 = inlined_call_operand.vmem [shape: f32[1,16], index: 9, kind: input, shape index: {}]
  %s10 = inlined_call_operand.hbm [shape: f32[8,16], index: 10, kind: output, shape index: {}]
  %s11 = sld [smem:[#allocation0]]
  $region62: #{tpu_custom_call.1} parent=0
    _
  %s13 = ssub.s32 1, %s11
  %s14 = scalar_select 0, %s13, %s11
  $region1: #{tpu_custom_call.1} parent=0
    #allocation2 [shape = 'u8[65536]{0}', space=vmem, size = 0x10000, scoped, tag = 'input window, operand 2, single buffered']
    #allocation3 [shape = 's32[1]{0}', space=sflag, size = 0x4, scoped, tag = 'scoped memory for tpu_custom_call.1']
    #allocation4 [shape = 's32[1]{0}', space=sflag, size = 0x4, scoped, tag = 'scoped memory for tpu_custom_call.1']
    #allocation5 [shape = 'u8[512]{0}', space=vmem, size = 0x400, scoped, tag = 'input window, operand 5, single buffered']
    #allocation6 [shape = 's32[1]{0}', space=sflag, size = 0x4, scoped, tag = 'scoped memory for tpu_custom_call.1']
    #allocation7 [shape = 'u8[512]{0}', space=vmem, size = 0x400, scoped, tag = 'input window, operand 7, single buffered']
    #allocation8 [shape = 'u8[4096]{0}', space=vmem, size = 0x1000, scoped, tag = 'output window, operand 0, single buffered']
    %15 = vsyncpa [#allocation3], 0
    %16 = vsyncpa [#allocation6], 0
    %17 = vsyncpa [#allocation4], 0
    // Predicated region
    $region2: #{tpu_custom_call.1} parent=1 // pred_check
      _
    $region3: #{tpu_custom_call.1} parent=1 // pred_check_branch
      %19 = sbr.rel (0) target = $region5
    $region4: #{tpu_custom_call.1} parent=1 // pred_region
      _
    $region5: #{tpu_custom_call.1} parent=1 // pred_fallthru
      _
    // Predicated region
    $region6: #{tpu_custom_call.1} parent=1 // pred_check
      _
    $region7: #{tpu_custom_call.1} parent=1 // pred_check_branch
      %21 = sbr.rel (0) target = $region9
    $region8: #{tpu_custom_call.1} parent=1 // pred_region
      _
    $region9: #{tpu_custom_call.1} parent=1 // pred_fallthru
      _
    // Predicated region
    $region10: #{tpu_custom_call.1} parent=1 // pred_check
      _
    $region11: #{tpu_custom_call.1} parent=1 // pred_check_branch
      %23 = sbr.rel (0) target = $region13
    $region12: #{tpu_custom_call.1} parent=1 // pred_region
      %s25 = ssub.s32 2048, 2048
      %26 = vsyncadd [#allocation3], %s25
      %s27 = sshll.u32 [#allocation2], 4
      %s28 = int_to_ptr.vmem [resolvable:$true] %s27
      %33 = dma.hbm_to_vmem [thread:$0]  %s2, 2048, %s28, [#allocation3], 256, 256, 16
    $region13: #{tpu_custom_call.1} parent=1 // pred_fallthru
      _
    // Predicated region
    $region14: #{tpu_custom_call.1} parent=1 // pred_check
      _
    $region15: #{tpu_custom_call.1} parent=1 // pred_check_branch
      %35 = sbr.rel (0) target = $region17
    $region16: #{tpu_custom_call.1} parent=1 // pred_region
      _
    $region17: #{tpu_custom_call.1} parent=1 // pred_fallthru
      _
    // Predicated region
    $region18: #{tpu_custom_call.1} parent=1 // pred_check
      _
    $region19: #{tpu_custom_call.1} parent=1 // pred_check_branch
      %37 = sbr.rel (0) target = $region21
    $region20: #{tpu_custom_call.1} parent=1 // pred_region
      _
    $region21: #{tpu_custom_call.1} parent=1 // pred_fallthru
      _
    // Predicated region
    $region22: #{tpu_custom_call.1} parent=1 // pred_check
      _
    $region23: #{tpu_custom_call.1} parent=1 // pred_check_branch
      %39 = sbr.rel (0) target = $region25
    $region24: #{tpu_custom_call.1} parent=1 // pred_region
      %s41 = ssub.s32 16, 16
      %42 = vsyncadd [#allocation6], %s41
      %s44 = sshll.u32 [#allocation5], 4
      %s45 = int_to_ptr.vmem [resolvable:$true] %s44
      %47 = dma.hbm_to_vmem [thread:$0]  %s5, 16, %s45, [#allocation6]
    $region25: #{tpu_custom_call.1} parent=1 // pred_fallthru
      _
    // Predicated region
    $region26: #{tpu_custom_call.1} parent=1 // pred_check
      _
    $region27: #{tpu_custom_call.1} parent=1 // pred_check_branch
      %49 = sbr.rel (0) target = $region29
    $region28: #{tpu_custom_call.1} parent=1 // pred_region
      _
    $region29: #{tpu_custom_call.1} parent=1 // pred_fallthru
      _
    // Predicated region
    $region30: #{tpu_custom_call.1} parent=1 // pred_check
      _
    $region31: #{tpu_custom_call.1} parent=1 // pred_check_branch
      %51 = sbr.rel (0) target = $region33
    $region32: #{tpu_custom_call.1} parent=1 // pred_region
      %s53 = ssub.s32 16, 16
      %54 = vsyncadd [#allocation6], %s53
      %s56 = sshll.u32 [#allocation7], 4
      %s57 = int_to_ptr.vmem [resolvable:$true] %s56
      %59 = dma.hbm_to_vmem [thread:$0]  %s7, 16, %s57, [#allocation6]
    $region33: #{tpu_custom_call.1} parent=1 // pred_fallthru
      _
    // Predicated region
    $region34: #{tpu_custom_call.1} parent=1 // pred_check
      _
    $region35: #{tpu_custom_call.1} parent=1 // pred_check_branch
      %61 = sbr.rel (0) target = $region37
    $region36: #{tpu_custom_call.1} parent=1 // pred_region
      _
    $region37: #{tpu_custom_call.1} parent=1 // pred_fallthru
      _
    // Predicated region
    $region38: #{tpu_custom_call.1} parent=1 // pred_check
      _
    $region39: #{tpu_custom_call.1} parent=1 // pred_check_branch
      %63 = sbr.rel (0) target = $region41
    $region40: #{tpu_custom_call.1} parent=1 // pred_region
      _
    $region41: #{tpu_custom_call.1} parent=1 // pred_fallthru
      _
    // Predicated region
    $region42: #{tpu_custom_call.1} parent=1 // pred_check
      _
    $region43: #{tpu_custom_call.1} parent=1 // pred_check_branch
      %65 = sbr.rel (0) target = $region45
    $region44: #{tpu_custom_call.1} parent=1 // pred_region
      %66 = dma.done [#allocation3], 2048
    $region45: #{tpu_custom_call.1} parent=1 // pred_fallthru
      _
    // Predicated region
    $region46: #{tpu_custom_call.1} parent=1 // pred_check
      _
    $region47: #{tpu_custom_call.1} parent=1 // pred_check_branch
      %68 = sbr.rel (0) target = $region49
    $region48: #{tpu_custom_call.1} parent=1 // pred_region
      %69 = dma.done [#allocation6], 16
    $region49: #{tpu_custom_call.1} parent=1 // pred_fallthru
      _
    // Predicated region
    $region50: #{tpu_custom_call.1} parent=1 // pred_check
      _
    $region51: #{tpu_custom_call.1} parent=1 // pred_check_branch
      %71 = sbr.rel (0) target = $region53
    $region52: #{tpu_custom_call.1} parent=1 // pred_region
      %72 = dma.done [#allocation6], 16
    $region53: #{tpu_custom_call.1} parent=1 // pred_fallthru
      _
    %v73 = vld [vmem:[%s1] sm:$0xff]
    %v74 = vld [vmem:[%s1 + $0x8] sm:$0xff]
    %v75 = vld [vmem:[%s1 + $0x10] sm:$0xff]
    %v76 = vld [vmem:[%s1 + $0x18] sm:$0xff]
    %v77 = vld [vmem:[#allocation2] sm:$0xff]
    %v78 = vld [vmem:[#allocation2 + $0x8] sm:$0xff]
    %v79 = vld [vmem:[#allocation2 + $0x10] sm:$0xff]
    %v80 = vld [vmem:[#allocation2 + $0x18] sm:$0xff]
    %v81 = vld [vmem:[#allocation2 + $0x20] sm:$0xff]
    %v82 = vld [vmem:[#allocation2 + $0x28] sm:$0xff]
    %v83 = vld [vmem:[#allocation2 + $0x30] sm:$0xff]
    %v84 = vld [vmem:[#allocation2 + $0x38] sm:$0xff]
    %v85 = vld [vmem:[#allocation2 + $0x40] sm:$0xff]
    %v86 = vld [vmem:[#allocation2 + $0x48] sm:$0xff]
    %v87 = vld [vmem:[#allocation2 + $0x50] sm:$0xff]
    %v88 = vld [vmem:[#allocation2 + $0x58] sm:$0xff]
    %v89 = vld [vmem:[#allocation2 + $0x60] sm:$0xff]
    %v90 = vld [vmem:[#allocation2 + $0x68] sm:$0xff]
    %v91 = vld [vmem:[#allocation2 + $0x70] sm:$0xff]
    %v92 = vld [vmem:[#allocation2 + $0x78] sm:$0xff]
    %v93 = vld [vmem:[%s3] sm:$0x3]
    %v94 = vld [vmem:[%s0] sm:$0xff]
    %vm95 = vcmask 523264
    %v97 = vsel %vm95, 0.0, 0
    %99 = vmatprep.subr.mxu0 %v78
    %100 = vmatpush1.msra.mxu0 %v77
    %101 = vmatprep.subr.mxu0 %v80
    %102 = vmatpush1.msra.mxu0 %v79
    %103 = vmatprep.subr.mxu0 %v82
    %104 = vmatpush1.msra.mxu0 %v81
    %105 = vmatprep.subr.mxu0 %v84
    %106 = vmatpush1.msra.mxu0 %v83
    %107 = vmatprep.subr.mxu0 %v86
    %108 = vmatpush1.msra.mxu0 %v85
    %109 = vmatprep.subr.mxu0 %v88
    %110 = vmatpush1.msra.mxu0 %v87
    %111 = vmatprep.subr.mxu0 %v90
    %112 = vmatpush1.msra.mxu0 %v89
    %113 = vmatprep.subr.mxu0 %v92
    %114 = vmatpush1.msra.mxu0 %v91
    %115 = vmatprep.subr.mxu0 0.0
    %116 = vmatpush1.msra.mxu0 0.0
    %117 = vmatprep.subr.mxu0 0.0
    %118 = vmatpush1.msra.mxu0 0.0
    %119 = vmatprep.subr.mxu0 0.0
    %120 = vmatpush1.msra.mxu0 0.0
    %121 = vmatprep.subr.mxu0 0.0
    %122 = vmatpush1.msra.mxu0 0.0
    %123 = vmatprep.subr.mxu0 0.0
    %124 = vmatpush1.msra.mxu0 0.0
    %125 = vmatprep.subr.mxu0 0.0
    %126 = vmatpush1.msra.mxu0 0.0
    %127 = vmatprep.subr.mxu0 0.0
    %128 = vmatpush1.msra.mxu0 0.0
    %129 = vmatprep.subr.mxu0 0.0
    %130 = vmatpush1.msra.mxu0 0.0
    %131 = vmatprep.subr.mxu0 0.0
    %132 = vmatpush1.msra.mxu0 0.0
    %133 = vmatprep.subr.mxu0 0.0
    %134 = vmatpush1.msra.mxu0 0.0
    %135 = vmatprep.subr.mxu0 0.0
    %136 = vmatpush1.msra.mxu0 0.0
    %137 = vmatprep.subr.mxu0 0.0
    %138 = vmatpush1.msra.mxu0 0.0
    %139 = vmatprep.subr.mxu0 0.0
    %140 = vmatpush1.msra.mxu0 0.0
    %141 = vmatprep.subr.mxu0 0.0
    %142 = vmatpush1.msra.mxu0 0.0
    %143 = vmatprep.subr.mxu0 0.0
    %144 = vmatpush1.msra.mxu0 0.0
    %145 = vmatprep.subr.mxu0 0.0
    %146 = vmatpush1.msra.mxu0 0.0
    %147 = vmatprep.subr.mxu0 0.0
    %148 = vmatpush1.msra.mxu0 0.0
    %149 = vmatprep.subr.mxu0 0.0
    %150 = vmatpush1.msra.mxu0 0.0
    %151 = vmatprep.subr.mxu0 0.0
    %152 = vmatpush1.msra.mxu0 0.0
    %153 = vmatprep.subr.mxu0 0.0
    %154 = vmatpush1.msra.mxu0 0.0
    %155 = vmatprep.subr.mxu0 0.0
    %156 = vmatpush1.msra.mxu0 0.0
    %157 = vmatprep.subr.mxu0 0.0
    %158 = vmatpush1.msra.mxu0 0.0
    %159 = vmatprep.subr.mxu0 0.0
    %160 = vmatpush1.msra.mxu0 0.0
    %161 = vmatprep.subr.mxu0 0.0
    %162 = vmatpush1.msra.mxu0 0.0
    %163 = vmatprep.mubr.f32.mxu0 0.0
    %164 = vmatmul.mubr.f32.gmra.mrb[0].mxu0 %v97
    %v165 = vpop.f32.mrb[0].mxu0
    %v166 = vadd.f32 0.0, %v165
    %v167 = vpop.f32.mrb[0].mxu0
    %v168 = vadd.f32 0.0, %v167
    %169 = vdwg.mxu0
    %vm170 = vcmask 130048
    %v172 = vsel %vm170, %v94, 0
    %174 = vmatprep.subr.mxu0 %v74
    %175 = vmatpush1.msra.mxu0 %v73
    %176 = vmatprep.subr.mxu0 %v76
    %177 = vmatpush1.msra.mxu0 %v75
    %178 = vmatprep.subr.mxu0 0.0
    %179 = vmatpush1.msra.mxu0 0.0
    %180 = vmatprep.subr.mxu0 0.0
    %181 = vmatpush1.msra.mxu0 0.0
    %182 = vmatprep.subr.mxu0 0.0
    %183 = vmatpush1.msra.mxu0 0.0
    %184 = vmatprep.subr.mxu0 0.0
    %185 = vmatpush1.msra.mxu0 0.0
    %186 = vmatprep.subr.mxu0 0.0
    %187 = vmatpush1.msra.mxu0 0.0
    %188 = vmatprep.subr.mxu0 0.0
    %189 = vmatpush1.msra.mxu0 0.0
    %190 = vmatprep.subr.mxu0 0.0
    %191 = vmatpush1.msra.mxu0 0.0
    %192 = vmatprep.subr.mxu0 0.0
    %193 = vmatpush1.msra.mxu0 0.0
    %194 = vmatprep.subr.mxu0 0.0
    %195 = vmatpush1.msra.mxu0 0.0
    %196 = vmatprep.subr.mxu0 0.0
    %197 = vmatpush1.msra.mxu0 0.0
    %198 = vmatprep.subr.mxu0 0.0
    %199 = vmatpush1.msra.mxu0 0.0
    %200 = vmatprep.subr.mxu0 0.0
    %201 = vmatpush1.msra.mxu0 0.0
    %202 = vmatprep.subr.mxu0 0.0
    %203 = vmatpush1.msra.mxu0 0.0
    %204 = vmatprep.subr.mxu0 0.0
    %205 = vmatpush1.msra.mxu0 0.0
    %206 = vmatprep.subr.mxu0 0.0
    %207 = vmatpush1.msra.mxu0 0.0
    %208 = vmatprep.subr.mxu0 0.0
    %209 = vmatpush1.msra.mxu0 0.0
    %210 = vmatprep.subr.mxu0 0.0
    %211 = vmatpush1.msra.mxu0 0.0
    %212 = vmatprep.subr.mxu0 0.0
    %213 = vmatpush1.msra.mxu0 0.0
    %214 = vmatprep.subr.mxu0 0.0
    %215 = vmatpush1.msra.mxu0 0.0
    %216 = vmatprep.subr.mxu0 0.0
    %217 = vmatpush1.msra.mxu0 0.0
    %218 = vmatprep.subr.mxu0 0.0
    %219 = vmatpush1.msra.mxu0 0.0
    %220 = vmatprep.subr.mxu0 0.0
    %221 = vmatpush1.msra.mxu0 0.0
    %222 = vmatprep.subr.mxu0 0.0
    %223 = vmatpush1.msra.mxu0 0.0
    %224 = vmatprep.subr.mxu0 0.0
    %225 = vmatpush1.msra.mxu0 0.0
    %226 = vmatprep.subr.mxu0 0.0
    %227 = vmatpush1.msra.mxu0 0.0
    %228 = vmatprep.subr.mxu0 0.0
    %229 = vmatpush1.msra.mxu0 0.0
    %230 = vmatprep.subr.mxu0 0.0
    %231 = vmatpush1.msra.mxu0 0.0
    %232 = vmatprep.subr.mxu0 0.0
    %233 = vmatpush1.msra.mxu0 0.0
    %234 = vmatprep.subr.mxu0 0.0
    %235 = vmatpush1.msra.mxu0 0.0
    %236 = vmatprep.subr.mxu0 0.0
    %237 = vmatpush1.msra.mxu0 0.0
    %238 = vmatprep.mubr.f32.mxu0 0.0
    %239 = vmatmul.mubr.f32.gmra.mrb[0].mxu0 %v172
    %v240 = vpop.f32.mrb[0].mxu0
    %v241 = vadd.f32 %v166, %v240
    %v242 = vpop.f32.mrb[0].mxu0
    %v243 = vadd.f32 %v168, %v242
    %244 = vdwg.mxu0
    %v246 = vlaneseq
    %v247 = vshrl.u32 %v246, 7
    %v248 = vsub.s32 0, %v247
    %v249 = vrot.slane %v93, %v248
    %v250 = vlaneseq
    %v251 = vshrl.u32 %v250, 7
    %v252 = vsub.s32 1, %v251
    %v253 = vrot.slane %v93, %v252
    %v256 = vadd.f32 %v241, %v249
    %v257 = vadd.f32 %v243, %v253
    %v258 = vxor.u32 %v256, 2147483648
    %v259 = vmul.f32 %v258, 1.442695
    %v260 = vpow.pop %v259
    %v261 = vadd.f32 %v260, 1.0
    %v262 = vrcp.pop %v261
    %v263 = vmul.f32 1.0, %v262
    %v264 = vtanh.pop %v257
    %v265 = vxor.u32 %v257, 2147483648
    %v266 = vmul.f32 %v265, 1.442695
    %v267 = vpow.pop %v266
    %v268 = vadd.f32 %v267, 1.0
    %v269 = vrcp.pop %v268
    %v270 = vmul.f32 1.0, %v269
    %v271 = vmul.f32 %v263, 0.0
    %v272 = vmul.f32 %v263, %v264
    %274 = vrot.lane.b32.xlu0 %v272, 64
    %v275 = vpop.permute.xlu0 %274
    %v277 = vadd.f32 %v271, %v275
    %v278 = vtanh.pop %v277
    %v279 = vmul.f32 %v270, %v278
    %s280 = scalar_lea.vmem %s0, 8
    %v281 = vld [vmem:[%s280] sm:$0xff]
    %283 = vrot.lane.b32.xlu0 %v279, 64
    %v284 = vpop.permute.xlu0 %283
    %v285 = vsel %vm95, %v284, 0
    %287 = vmatprep.subr.mxu0 %v78
    %288 = vmatpush1.msra.mxu0 %v77
    %289 = vmatprep.subr.mxu0 %v80
    %290 = vmatpush1.msra.mxu0 %v79
    %291 = vmatprep.subr.mxu0 %v82
    %292 = vmatpush1.msra.mxu0 %v81
    %293 = vmatprep.subr.mxu0 %v84
    %294 = vmatpush1.msra.mxu0 %v83
    %295 = vmatprep.subr.mxu0 %v86
    %296 = vmatpush1.msra.mxu0 %v85
    %297 = vmatprep.subr.mxu0 %v88
    %298 = vmatpush1.msra.mxu0 %v87
    %299 = vmatprep.subr.mxu0 %v90
    %300 = vmatpush1.msra.mxu0 %v89
    %301 = vmatprep.subr.mxu0 %v92
    %302 = vmatpush1.msra.mxu0 %v91
    %303 = vmatprep.subr.mxu0 0.0
    %304 = vmatpush1.msra.mxu0 0.0
    %305 = vmatprep.subr.mxu0 0.0
    %306 = vmatpush1.msra.mxu0 0.0
    %307 = vmatprep.subr.mxu0 0.0
    %308 = vmatpush1.msra.mxu0 0.0
    %309 = vmatprep.subr.mxu0 0.0
    %310 = vmatpush1.msra.mxu0 0.0
    %311 = vmatprep.subr.mxu0 0.0
    %312 = vmatpush1.msra.mxu0 0.0
    %313 = vmatprep.subr.mxu0 0.0
    %314 = vmatpush1.msra.mxu0 0.0
    %315 = vmatprep.subr.mxu0 0.0
    %316 = vmatpush1.msra.mxu0 0.0
    %317 = vmatprep.subr.mxu0 0.0
    %318 = vmatpush1.msra.mxu0 0.0
    %319 = vmatprep.subr.mxu0 0.0
    %320 = vmatpush1.msra.mxu0 0.0
    %321 = vmatprep.subr.mxu0 0.0
    %322 = vmatpush1.msra.mxu0 0.0
    %323 = vmatprep.subr.mxu0 0.0
    %324 = vmatpush1.msra.mxu0 0.0
    %325 = vmatprep.subr.mxu0 0.0
    %326 = vmatpush1.msra.mxu0 0.0
    %327 = vmatprep.subr.mxu0 0.0
    %328 = vmatpush1.msra.mxu0 0.0
    %329 = vmatprep.subr.mxu0 0.0
    %330 = vmatpush1.msra.mxu0 0.0
    %331 = vmatprep.subr.mxu0 0.0
    %332 = vmatpush1.msra.mxu0 0.0
    %333 = vmatprep.subr.mxu0 0.0
    %334 = vmatpush1.msra.mxu0 0.0
    %335 = vmatprep.subr.mxu0 0.0
    %336 = vmatpush1.msra.mxu0 0.0
    %337 = vmatprep.subr.mxu0 0.0
    %338 = vmatpush1.msra.mxu0 0.0
    %339 = vmatprep.subr.mxu0 0.0
    %340 = vmatpush1.msra.mxu0 0.0
    %341 = vmatprep.subr.mxu0 0.0
    %342 = vmatpush1.msra.mxu0 0.0
    %343 = vmatprep.subr.mxu0 0.0
    %344 = vmatpush1.msra.mxu0 0.0
    %345 = vmatprep.subr.mxu0 0.0
    %346 = vmatpush1.msra.mxu0 0.0
    %347 = vmatprep.subr.mxu0 0.0
    %348 = vmatpush1.msra.mxu0 0.0
    %349 = vmatprep.subr.mxu0 0.0
    %350 = vmatpush1.msra.mxu0 0.0
    %351 = vmatprep.mubr.f32.mxu0 0.0
    %352 = vmatmul.mubr.f32.gmra.mrb[0].mxu0 %v285
    %v353 = vpop.f32.mrb[0].mxu0
    %v354 = vadd.f32 0.0, %v353
    %v355 = vpop.f32.mrb[0].mxu0
    %v356 = vadd.f32 0.0, %v355
    %357 = vdwg.mxu0
    %v359 = vsel %vm170, %v281, 0
    %361 = vmatprep.subr.mxu0 %v74
    %362 = vmatpush1.msra.mxu0 %v73
    %363 = vmatprep.subr.mxu0 %v76
    %364 = vmatpush1.msra.mxu0 %v75
    %365 = vmatprep.subr.mxu0 0.0
    %366 = vmatpush1.msra.mxu0 0.0
    %367 = vmatprep.subr.mxu0 0.0
    %368 = vmatpush1.msra.mxu0 0.0
    %369 = vmatprep.subr.mxu0 0.0
    %370 = vmatpush1.msra.mxu0 0.0
    %371 = vmatprep.subr.mxu0 0.0
    %372 = vmatpush1.msra.mxu0 0.0
    %373 = vmatprep.subr.mxu0 0.0
    %374 = vmatpush1.msra.mxu0 0.0
    %375 = vmatprep.subr.mxu0 0.0
    %376 = vmatpush1.msra.mxu0 0.0
    %377 = vmatprep.subr.mxu0 0.0
    %378 = vmatpush1.msra.mxu0 0.0
    %379 = vmatprep.subr.mxu0 0.0
    %380 = vmatpush1.msra.mxu0 0.0
    %381 = vmatprep.subr.mxu0 0.0
    %382 = vmatpush1.msra.mxu0 0.0
    %383 = vmatprep.subr.mxu0 0.0
    %384 = vmatpush1.msra.mxu0 0.0
    %385 = vmatprep.subr.mxu0 0.0
    %386 = vmatpush1.msra.mxu0 0.0
    %387 = vmatprep.subr.mxu0 0.0
    %388 = vmatpush1.msra.mxu0 0.0
    %389 = vmatprep.subr.mxu0 0.0
    %390 = vmatpush1.msra.mxu0 0.0
    %391 = vmatprep.subr.mxu0 0.0
    %392 = vmatpush1.msra.mxu0 0.0
    %393 = vmatprep.subr.mxu0 0.0
    %394 = vmatpush1.msra.mxu0 0.0
    %395 = vmatprep.subr.mxu0 0.0
    %396 = vmatpush1.msra.mxu0 0.0
    %397 = vmatprep.subr.mxu0 0.0
    %398 = vmatpush1.msra.mxu0 0.0
    %399 = vmatprep.subr.mxu0 0.0
    %400 = vmatpush1.msra.mxu0 0.0
    %401 = vmatprep.subr.mxu0 0.0
    %402 = vmatpush1.msra.mxu0 0.0
    %403 = vmatprep.subr.mxu0 0.0
    %404 = vmatpush1.msra.mxu0 0.0
    %405 = vmatprep.subr.mxu0 0.0
    %406 = vmatpush1.msra.mxu0 0.0
    %407 = vmatprep.subr.mxu0 0.0
    %408 = vmatpush1.msra.mxu0 0.0
    %409 = vmatprep.subr.mxu0 0.0
    %410 = vmatpush1.msra.mxu0 0.0
    %411 = vmatprep.subr.mxu0 0.0
    %412 = vmatpush1.msra.mxu0 0.0
    %413 = vmatprep.subr.mxu0 0.0
    %414 = vmatpush1.msra.mxu0 0.0
    %415 = vmatprep.subr.mxu0 0.0
    %416 = vmatpush1.msra.mxu0 0.0
    %417 = vmatprep.subr.mxu0 0.0
    %418 = vmatpush1.msra.mxu0 0.0
    %419 = vmatprep.subr.mxu0 0.0
    %420 = vmatpush1.msra.mxu0 0.0
    %421 = vmatprep.subr.mxu0 0.0
    %422 = vmatpush1.msra.mxu0 0.0
    %423 = vmatprep.subr.mxu0 0.0
    %424 = vmatpush1.msra.mxu0 0.0
    %425 = vmatprep.mubr.f32.mxu0 0.0
    %426 = vmatmul.mubr.f32.gmra.mrb[0].mxu0 %v359
    %v427 = vpop.f32.mrb[0].mxu0
    %v428 = vadd.f32 %v354, %v427
    %v429 = vpop.f32.mrb[0].mxu0
    %v430 = vadd.f32 %v356, %v429
    %431 = vdwg.mxu0
    %v432 = vadd.f32 %v428, %v249
    %v433 = vadd.f32 %v430, %v253
    %v434 = vxor.u32 %v432, 2147483648
    %v435 = vmul.f32 %v434, 1.442695
    %v436 = vpow.pop %v435
    %v437 = vadd.f32 %v436, 1.0
    %v438 = vrcp.pop %v437
    %v439 = vmul.f32 1.0, %v438
    %v440 = vtanh.pop %v433
    %v441 = vxor.u32 %v433, 2147483648
    %v442 = vmul.f32 %v441, 1.442695
    %v443 = vpow.pop %v442
    %v444 = vadd.f32 %v443, 1.0
    %v445 = vrcp.pop %v444
    %v446 = vmul.f32 1.0, %v445
    %v447 = vmul.f32 %v439, %v277
    %v448 = vmul.f32 %v439, %v440
    %450 = vrot.lane.b32.xlu0 %v448, 64
    %v451 = vpop.permute.xlu0 %450
    %v453 = vadd.f32 %v447, %v451
    %v454 = vtanh.pop %v453
    %v455 = vmul.f32 %v446, %v454
    %s456 = scalar_lea.vmem %s0, 16
    %v457 = vld [vmem:[%s456] sm:$0xff]
    %459 = vrot.lane.b32.xlu0 %v455, 64
    %v460 = vpop.permute.xlu0 %459
    %v461 = vsel %vm95, %v460, 0
    %463 = vmatprep.subr.mxu0 %v78
    %464 = vmatpush1.msra.mxu0 %v77
    %465 = vmatprep.subr.mxu0 %v80
    %466 = vmatpush1.msra.mxu0 %v79
    %467 = vmatprep.subr.mxu0 %v82
    %468 = vmatpush1.msra.mxu0 %v81
    %469 = vmatprep.subr.mxu0 %v84
    %470 = vmatpush1.msra.mxu0 %v83
    %471 = vmatprep.subr.mxu0 %v86
    %472 = vmatpush1.msra.mxu0 %v85
    %473 = vmatprep.subr.mxu0 %v88
    %474 = vmatpush1.msra.mxu0 %v87
    %475 = vmatprep.subr.mxu0 %v90
    %476 = vmatpush1.msra.mxu0 %v89
    %477 = vmatprep.subr.mxu0 %v92
    %478 = vmatpush1.msra.mxu0 %v91
    %479 = vmatprep.subr.mxu0 0.0
    %480 = vmatpush1.msra.mxu0 0.0
    %481 = vmatprep.subr.mxu0 0.0
    %482 = vmatpush1.msra.mxu0 0.0
    %483 = vmatprep.subr.mxu0 0.0
    %484 = vmatpush1.msra.mxu0 0.0
    %485 = vmatprep.subr.mxu0 0.0
    %486 = vmatpush1.msra.mxu0 0.0
    %487 = vmatprep.subr.mxu0 0.0
    %488 = vmatpush1.msra.mxu0 0.0
    %489 = vmatprep.subr.mxu0 0.0
    %490 = vmatpush1.msra.mxu0 0.0
    %491 = vmatprep.subr.mxu0 0.0
    %492 = vmatpush1.msra.mxu0 0.0
    %493 = vmatprep.subr.mxu0 0.0
    %494 = vmatpush1.msra.mxu0 0.0
    %495 = vmatprep.subr.mxu0 0.0
    %496 = vmatpush1.msra.mxu0 0.0
    %497 = vmatprep.subr.mxu0 0.0
    %498 = vmatpush1.msra.mxu0 0.0
    %499 = vmatprep.subr.mxu0 0.0
    %500 = vmatpush1.msra.mxu0 0.0
    %501 = vmatprep.subr.mxu0 0.0
    %502 = vmatpush1.msra.mxu0 0.0
    %503 = vmatprep.subr.mxu0 0.0
    %504 = vmatpush1.msra.mxu0 0.0
    %505 = vmatprep.subr.mxu0 0.0
    %506 = vmatpush1.msra.mxu0 0.0
    %507 = vmatprep.subr.mxu0 0.0
    %508 = vmatpush1.msra.mxu0 0.0
    %509 = vmatprep.subr.mxu0 0.0
    %510 = vmatpush1.msra.mxu0 0.0
    %511 = vmatprep.subr.mxu0 0.0
    %512 = vmatpush1.msra.mxu0 0.0
    %513 = vmatprep.subr.mxu0 0.0
    %514 = vmatpush1.msra.mxu0 0.0
    %515 = vmatprep.subr.mxu0 0.0
    %516 = vmatpush1.msra.mxu0 0.0
    %517 = vmatprep.subr.mxu0 0.0
    %518 = vmatpush1.msra.mxu0 0.0
    %519 = vmatprep.subr.mxu0 0.0
    %520 = vmatpush1.msra.mxu0 0.0
    %521 = vmatprep.subr.mxu0 0.0
    %522 = vmatpush1.msra.mxu0 0.0
    %523 = vmatprep.subr.mxu0 0.0
    %524 = vmatpush1.msra.mxu0 0.0
    %525 = vmatprep.subr.mxu0 0.0
    %526 = vmatpush1.msra.mxu0 0.0
    %527 = vmatprep.mubr.f32.mxu0 0.0
    %528 = vmatmul.mubr.f32.gmra.mrb[0].mxu0 %v461
    %v529 = vpop.f32.mrb[0].mxu0
    %v530 = vadd.f32 0.0, %v529
    %v531 = vpop.f32.mrb[0].mxu0
    %v532 = vadd.f32 0.0, %v531
    %533 = vdwg.mxu0
    %v535 = vsel %vm170, %v457, 0
    %537 = vmatprep.subr.mxu0 %v74
    %538 = vmatpush1.msra.mxu0 %v73
    %539 = vmatprep.subr.mxu0 %v76
    %540 = vmatpush1.msra.mxu0 %v75
    %541 = vmatprep.subr.mxu0 0.0
    %542 = vmatpush1.msra.mxu0 0.0
    %543 = vmatprep.subr.mxu0 0.0
    %544 = vmatpush1.msra.mxu0 0.0
    %545 = vmatprep.subr.mxu0 0.0
    %546 = vmatpush1.msra.mxu0 0.0
    %547 = vmatprep.subr.mxu0 0.0
    %548 = vmatpush1.msra.mxu0 0.0
    %549 = vmatprep.subr.mxu0 0.0
    %550 = vmatpush1.msra.mxu0 0.0
    %551 = vmatprep.subr.mxu0 0.0
    %552 = vmatpush1.msra.mxu0 0.0
    %553 = vmatprep.subr.mxu0 0.0
    %554 = vmatpush1.msra.mxu0 0.0
    %555 = vmatprep.subr.mxu0 0.0
    %556 = vmatpush1.msra.mxu0 0.0
    %557 = vmatprep.subr.mxu0 0.0
    %558 = vmatpush1.msra.mxu0 0.0
    %559 = vmatprep.subr.mxu0 0.0
    %560 = vmatpush1.msra.mxu0 0.0
    %561 = vmatprep.subr.mxu0 0.0
    %562 = vmatpush1.msra.mxu0 0.0
    %563 = vmatprep.subr.mxu0 0.0
    %564 = vmatpush1.msra.mxu0 0.0
    %565 = vmatprep.subr.mxu0 0.0
    %566 = vmatpush1.msra.mxu0 0.0
    %567 = vmatprep.subr.mxu0 0.0
    %568 = vmatpush1.msra.mxu0 0.0
    %569 = vmatprep.subr.mxu0 0.0
    %570 = vmatpush1.msra.mxu0 0.0
    %571 = vmatprep.subr.mxu0 0.0
    %572 = vmatpush1.msra.mxu0 0.0
    %573 = vmatprep.subr.mxu0 0.0
    %574 = vmatpush1.msra.mxu0 0.0
    %575 = vmatprep.subr.mxu0 0.0
    %576 = vmatpush1.msra.mxu0 0.0
    %577 = vmatprep.subr.mxu0 0.0
    %578 = vmatpush1.msra.mxu0 0.0
    %579 = vmatprep.subr.mxu0 0.0
    %580 = vmatpush1.msra.mxu0 0.0
    %581 = vmatprep.subr.mxu0 0.0
    %582 = vmatpush1.msra.mxu0 0.0
    %583 = vmatprep.subr.mxu0 0.0
    %584 = vmatpush1.msra.mxu0 0.0
    %585 = vmatprep.subr.mxu0 0.0
    %586 = vmatpush1.msra.mxu0 0.0
    %587 = vmatprep.subr.mxu0 0.0
    %588 = vmatpush1.msra.mxu0 0.0
    %589 = vmatprep.subr.mxu0 0.0
    %590 = vmatpush1.msra.mxu0 0.0
    %591 = vmatprep.subr.mxu0 0.0
    %592 = vmatpush1.msra.mxu0 0.0
    %593 = vmatprep.subr.mxu0 0.0
    %594 = vmatpush1.msra.mxu0 0.0
    %595 = vmatprep.subr.mxu0 0.0
    %596 = vmatpush1.msra.mxu0 0.0
    %597 = vmatprep.subr.mxu0 0.0
    %598 = vmatpush1.msra.mxu0 0.0
    %599 = vmatprep.subr.mxu0 0.0
    %600 = vmatpush1.msra.mxu0 0.0
    %601 = vmatprep.mubr.f32.mxu0 0.0
    %602 = vmatmul.mubr.f32.gmra.mrb[0].mxu0 %v535
    %v603 = vpop.f32.mrb[0].mxu0
    %v604 = vadd.f32 %v530, %v603
    %v605 = vpop.f32.mrb[0].mxu0
    %v606 = vadd.f32 %v532, %v605
    %607 = vdwg.mxu0
    %v608 = vadd.f32 %v604, %v249
    %v609 = vadd.f32 %v606, %v253
    %v610 = vxor.u32 %v608, 2147483648
    %v611 = vmul.f32 %v610, 1.442695
    %v612 = vpow.pop %v611
    %v613 = vadd.f32 %v612, 1.0
    %v614 = vrcp.pop %v613
    %v615 = vmul.f32 1.0, %v614
    %v616 = vtanh.pop %v609
    %v617 = vxor.u32 %v609, 2147483648
    %v618 = vmul.f32 %v617, 1.442695
    %v619 = vpow.pop %v618
    %v620 = vadd.f32 %v619, 1.0
    %v621 = vrcp.pop %v620
    %v622 = vmul.f32 1.0, %v621
    %v623 = vmul.f32 %v615, %v453
    %v624 = vmul.f32 %v615, %v616
    %626 = vrot.lane.b32.xlu0 %v624, 64
    %v627 = vpop.permute.xlu0 %626
    %v629 = vadd.f32 %v623, %v627
    %v630 = vtanh.pop %v629
    %v631 = vmul.f32 %v622, %v630
    %s632 = scalar_lea.vmem %s0, 24
    %v633 = vld [vmem:[%s632] sm:$0xff]
    %635 = vrot.lane.b32.xlu0 %v631, 64
    %v636 = vpop.permute.xlu0 %635
    %v637 = vsel %vm95, %v636, 0
    %639 = vmatprep.subr.mxu0 %v78
    %640 = vmatpush1.msra.mxu0 %v77
    %641 = vmatprep.subr.mxu0 %v80
    %642 = vmatpush1.msra.mxu0 %v79
    %643 = vmatprep.subr.mxu0 %v82
    %644 = vmatpush1.msra.mxu0 %v81
    %645 = vmatprep.subr.mxu0 %v84
    %646 = vmatpush1.msra.mxu0 %v83
    %647 = vmatprep.subr.mxu0 %v86
    %648 = vmatpush1.msra.mxu0 %v85
    %649 = vmatprep.subr.mxu0 %v88
    %650 = vmatpush1.msra.mxu0 %v87
    %651 = vmatprep.subr.mxu0 %v90
    %652 = vmatpush1.msra.mxu0 %v89
    %653 = vmatprep.subr.mxu0 %v92
    %654 = vmatpush1.msra.mxu0 %v91
    %655 = vmatprep.subr.mxu0 0.0
    %656 = vmatpush1.msra.mxu0 0.0
    %657 = vmatprep.subr.mxu0 0.0
    %658 = vmatpush1.msra.mxu0 0.0
    %659 = vmatprep.subr.mxu0 0.0
    %660 = vmatpush1.msra.mxu0 0.0
    %661 = vmatprep.subr.mxu0 0.0
    %662 = vmatpush1.msra.mxu0 0.0
    %663 = vmatprep.subr.mxu0 0.0
    %664 = vmatpush1.msra.mxu0 0.0
    %665 = vmatprep.subr.mxu0 0.0
    %666 = vmatpush1.msra.mxu0 0.0
    %667 = vmatprep.subr.mxu0 0.0
    %668 = vmatpush1.msra.mxu0 0.0
    %669 = vmatprep.subr.mxu0 0.0
    %670 = vmatpush1.msra.mxu0 0.0
    %671 = vmatprep.subr.mxu0 0.0
    %672 = vmatpush1.msra.mxu0 0.0
    %673 = vmatprep.subr.mxu0 0.0
    %674 = vmatpush1.msra.mxu0 0.0
    %675 = vmatprep.subr.mxu0 0.0
    %676 = vmatpush1.msra.mxu0 0.0
    %677 = vmatprep.subr.mxu0 0.0
    %678 = vmatpush1.msra.mxu0 0.0
    %679 = vmatprep.subr.mxu0 0.0
    %680 = vmatpush1.msra.mxu0 0.0
    %681 = vmatprep.subr.mxu0 0.0
    %682 = vmatpush1.msra.mxu0 0.0
    %683 = vmatprep.subr.mxu0 0.0
    %684 = vmatpush1.msra.mxu0 0.0
    %685 = vmatprep.subr.mxu0 0.0
    %686 = vmatpush1.msra.mxu0 0.0
    %687 = vmatprep.subr.mxu0 0.0
    %688 = vmatpush1.msra.mxu0 0.0
    %689 = vmatprep.subr.mxu0 0.0
    %690 = vmatpush1.msra.mxu0 0.0
    %691 = vmatprep.subr.mxu0 0.0
    %692 = vmatpush1.msra.mxu0 0.0
    %693 = vmatprep.subr.mxu0 0.0
    %694 = vmatpush1.msra.mxu0 0.0
    %695 = vmatprep.subr.mxu0 0.0
    %696 = vmatpush1.msra.mxu0 0.0
    %697 = vmatprep.subr.mxu0 0.0
    %698 = vmatpush1.msra.mxu0 0.0
    %699 = vmatprep.subr.mxu0 0.0
    %700 = vmatpush1.msra.mxu0 0.0
    %701 = vmatprep.subr.mxu0 0.0
    %702 = vmatpush1.msra.mxu0 0.0
    %703 = vmatprep.mubr.f32.mxu0 0.0
    %704 = vmatmul.mubr.f32.gmra.mrb[0].mxu0 %v637
    %v705 = vpop.f32.mrb[0].mxu0
    %v706 = vadd.f32 0.0, %v705
    %v707 = vpop.f32.mrb[0].mxu0
    %v708 = vadd.f32 0.0, %v707
    %709 = vdwg.mxu0
    %v711 = vsel %vm170, %v633, 0
    %713 = vmatprep.subr.mxu0 %v74
    %714 = vmatpush1.msra.mxu0 %v73
    %715 = vmatprep.subr.mxu0 %v76
    %716 = vmatpush1.msra.mxu0 %v75
    %717 = vmatprep.subr.mxu0 0.0
    %718 = vmatpush1.msra.mxu0 0.0
    %719 = vmatprep.subr.mxu0 0.0
    %720 = vmatpush1.msra.mxu0 0.0
    %721 = vmatprep.subr.mxu0 0.0
    %722 = vmatpush1.msra.mxu0 0.0
    %723 = vmatprep.subr.mxu0 0.0
    %724 = vmatpush1.msra.mxu0 0.0
    %725 = vmatprep.subr.mxu0 0.0
    %726 = vmatpush1.msra.mxu0 0.0
    %727 = vmatprep.subr.mxu0 0.0
    %728 = vmatpush1.msra.mxu0 0.0
    %729 = vmatprep.subr.mxu0 0.0
    %730 = vmatpush1.msra.mxu0 0.0
    %731 = vmatprep.subr.mxu0 0.0
    %732 = vmatpush1.msra.mxu0 0.0
    %733 = vmatprep.subr.mxu0 0.0
    %734 = vmatpush1.msra.mxu0 0.0
    %735 = vmatprep.subr.mxu0 0.0
    %736 = vmatpush1.msra.mxu0 0.0
    %737 = vmatprep.subr.mxu0 0.0
    %738 = vmatpush1.msra.mxu0 0.0
    %739 = vmatprep.subr.mxu0 0.0
    %740 = vmatpush1.msra.mxu0 0.0
    %741 = vmatprep.subr.mxu0 0.0
    %742 = vmatpush1.msra.mxu0 0.0
    %743 = vmatprep.subr.mxu0 0.0
    %744 = vmatpush1.msra.mxu0 0.0
    %745 = vmatprep.subr.mxu0 0.0
    %746 = vmatpush1.msra.mxu0 0.0
    %747 = vmatprep.subr.mxu0 0.0
    %748 = vmatpush1.msra.mxu0 0.0
    %749 = vmatprep.subr.mxu0 0.0
    %750 = vmatpush1.msra.mxu0 0.0
    %751 = vmatprep.subr.mxu0 0.0
    %752 = vmatpush1.msra.mxu0 0.0
    %753 = vmatprep.subr.mxu0 0.0
    %754 = vmatpush1.msra.mxu0 0.0
    %755 = vmatprep.subr.mxu0 0.0
    %756 = vmatpush1.msra.mxu0 0.0
    %757 = vmatprep.subr.mxu0 0.0
    %758 = vmatpush1.msra.mxu0 0.0
    %759 = vmatprep.subr.mxu0 0.0
    %760 = vmatpush1.msra.mxu0 0.0
    %761 = vmatprep.subr.mxu0 0.0
    %762 = vmatpush1.msra.mxu0 0.0
    %763 = vmatprep.subr.mxu0 0.0
    %764 = vmatpush1.msra.mxu0 0.0
    %765 = vmatprep.subr.mxu0 0.0
    %766 = vmatpush1.msra.mxu0 0.0
    %767 = vmatprep.subr.mxu0 0.0
    %768 = vmatpush1.msra.mxu0 0.0
    %769 = vmatprep.subr.mxu0 0.0
    %770 = vmatpush1.msra.mxu0 0.0
    %771 = vmatprep.subr.mxu0 0.0
    %772 = vmatpush1.msra.mxu0 0.0
    %773 = vmatprep.subr.mxu0 0.0
    %774 = vmatpush1.msra.mxu0 0.0
    %775 = vmatprep.subr.mxu0 0.0
    %776 = vmatpush1.msra.mxu0 0.0
    %777 = vmatprep.mubr.f32.mxu0 0.0
    %778 = vmatmul.mubr.f32.gmra.mrb[0].mxu0 %v711
    %v779 = vpop.f32.mrb[0].mxu0
    %v780 = vadd.f32 %v706, %v779
    %v781 = vpop.f32.mrb[0].mxu0
    %v782 = vadd.f32 %v708, %v781
    %783 = vdwg.mxu0
    %v784 = vadd.f32 %v780, %v249
    %v785 = vadd.f32 %v782, %v253
    %v786 = vxor.u32 %v784, 2147483648
    %v787 = vmul.f32 %v786, 1.442695
    %v788 = vpow.pop %v787
    %v789 = vadd.f32 %v788, 1.0
    %v790 = vrcp.pop %v789
    %v791 = vmul.f32 1.0, %v790
    %v792 = vtanh.pop %v785
    %v793 = vxor.u32 %v785, 2147483648
    %v794 = vmul.f32 %v793, 1.442695
    %v795 = vpow.pop %v794
    %v796 = vadd.f32 %v795, 1.0
    %v797 = vrcp.pop %v796
    %v798 = vmul.f32 1.0, %v797
    %v799 = vmul.f32 %v791, %v629
    %v800 = vmul.f32 %v791, %v792
    %802 = vrot.lane.b32.xlu0 %v800, 64
    %v803 = vpop.permute.xlu0 %802
    %v805 = vadd.f32 %v799, %v803
    %v806 = vtanh.pop %v805
    %v807 = vmul.f32 %v798, %v806
    %s808 = scalar_lea.vmem %s0, 32
    %v809 = vld [vmem:[%s808] sm:$0xff]
    %811 = vrot.lane.b32.xlu0 %v807, 64
    %v812 = vpop.permute.xlu0 %811
    %v813 = vsel %vm95, %v812, 0
    %815 = vmatprep.subr.mxu0 %v78
    %816 = vmatpush1.msra.mxu0 %v77
    %817 = vmatprep.subr.mxu0 %v80
    %818 = vmatpush1.msra.mxu0 %v79
    %819 = vmatprep.subr.mxu0 %v82
    %820 = vmatpush1.msra.mxu0 %v81
    %821 = vmatprep.subr.mxu0 %v84
    %822 = vmatpush1.msra.mxu0 %v83
    %823 = vmatprep.subr.mxu0 %v86
    %824 = vmatpush1.msra.mxu0 %v85
    %825 = vmatprep.subr.mxu0 %v88
    %826 = vmatpush1.msra.mxu0 %v87
    %827 = vmatprep.subr.mxu0 %v90
    %828 = vmatpush1.msra.mxu0 %v89
    %829 = vmatprep.subr.mxu0 %v92
    %830 = vmatpush1.msra.mxu0 %v91
    %831 = vmatprep.subr.mxu0 0.0
    %832 = vmatpush1.msra.mxu0 0.0
    %833 = vmatprep.subr.mxu0 0.0
    %834 = vmatpush1.msra.mxu0 0.0
    %835 = vmatprep.subr.mxu0 0.0
    %836 = vmatpush1.msra.mxu0 0.0
    %837 = vmatprep.subr.mxu0 0.0
    %838 = vmatpush1.msra.mxu0 0.0
    %839 = vmatprep.subr.mxu0 0.0
    %840 = vmatpush1.msra.mxu0 0.0
    %841 = vmatprep.subr.mxu0 0.0
    %842 = vmatpush1.msra.mxu0 0.0
    %843 = vmatprep.subr.mxu0 0.0
    %844 = vmatpush1.msra.mxu0 0.0
    %845 = vmatprep.subr.mxu0 0.0
    %846 = vmatpush1.msra.mxu0 0.0
    %847 = vmatprep.subr.mxu0 0.0
    %848 = vmatpush1.msra.mxu0 0.0
    %849 = vmatprep.subr.mxu0 0.0
    %850 = vmatpush1.msra.mxu0 0.0
    %851 = vmatprep.subr.mxu0 0.0
    %852 = vmatpush1.msra.mxu0 0.0
    %853 = vmatprep.subr.mxu0 0.0
    %854 = vmatpush1.msra.mxu0 0.0
    %855 = vmatprep.subr.mxu0 0.0
    %856 = vmatpush1.msra.mxu0 0.0
    %857 = vmatprep.subr.mxu0 0.0
    %858 = vmatpush1.msra.mxu0 0.0
    %859 = vmatprep.subr.mxu0 0.0
    %860 = vmatpush1.msra.mxu0 0.0
    %861 = vmatprep.subr.mxu0 0.0
    %862 = vmatpush1.msra.mxu0 0.0
    %863 = vmatprep.subr.mxu0 0.0
    %864 = vmatpush1.msra.mxu0 0.0
    %865 = vmatprep.subr.mxu0 0.0
    %866 = vmatpush1.msra.mxu0 0.0
    %867 = vmatprep.subr.mxu0 0.0
    %868 = vmatpush1.msra.mxu0 0.0
    %869 = vmatprep.subr.mxu0 0.0
    %870 = vmatpush1.msra.mxu0 0.0
    %871 = vmatprep.subr.mxu0 0.0
    %872 = vmatpush1.msra.mxu0 0.0
    %873 = vmatprep.subr.mxu0 0.0
    %874 = vmatpush1.msra.mxu0 0.0
    %875 = vmatprep.subr.mxu0 0.0
    %876 = vmatpush1.msra.mxu0 0.0
    %877 = vmatprep.subr.mxu0 0.0
    %878 = vmatpush1.msra.mxu0 0.0
    %879 = vmatprep.mubr.f32.mxu0 0.0
    %880 = vmatmul.mubr.f32.gmra.mrb[0].mxu0 %v813
    %v881 = vpop.f32.mrb[0].mxu0
    %v882 = vadd.f32 0.0, %v881
    %v883 = vpop.f32.mrb[0].mxu0
    %v884 = vadd.f32 0.0, %v883
    %885 = vdwg.mxu0
    %v887 = vsel %vm170, %v809, 0
    %889 = vmatprep.subr.mxu0 %v74
    %890 = vmatpush1.msra.mxu0 %v73
    %891 = vmatprep.subr.mxu0 %v76
    %892 = vmatpush1.msra.mxu0 %v75
    %893 = vmatprep.subr.mxu0 0.0
    %894 = vmatpush1.msra.mxu0 0.0
    %895 = vmatprep.subr.mxu0 0.0
    %896 = vmatpush1.msra.mxu0 0.0
    %897 = vmatprep.subr.mxu0 0.0
    %898 = vmatpush1.msra.mxu0 0.0
    %899 = vmatprep.subr.mxu0 0.0
    %900 = vmatpush1.msra.mxu0 0.0
    %901 = vmatprep.subr.mxu0 0.0
    %902 = vmatpush1.msra.mxu0 0.0
    %903 = vmatprep.subr.mxu0 0.0
    %904 = vmatpush1.msra.mxu0 0.0
    %905 = vmatprep.subr.mxu0 0.0
    %906 = vmatpush1.msra.mxu0 0.0
    %907 = vmatprep.subr.mxu0 0.0
    %908 = vmatpush1.msra.mxu0 0.0
    %909 = vmatprep.subr.mxu0 0.0
    %910 = vmatpush1.msra.mxu0 0.0
    %911 = vmatprep.subr.mxu0 0.0
    %912 = vmatpush1.msra.mxu0 0.0
    %913 = vmatprep.subr.mxu0 0.0
    %914 = vmatpush1.msra.mxu0 0.0
    %915 = vmatprep.subr.mxu0 0.0
    %916 = vmatpush1.msra.mxu0 0.0
    %917 = vmatprep.subr.mxu0 0.0
    %918 = vmatpush1.msra.mxu0 0.0
    %919 = vmatprep.subr.mxu0 0.0
    %920 = vmatpush1.msra.mxu0 0.0
    %921 = vmatprep.subr.mxu0 0.0
    %922 = vmatpush1.msra.mxu0 0.0
    %923 = vmatprep.subr.mxu0 0.0
    %924 = vmatpush1.msra.mxu0 0.0
    %925 = vmatprep.subr.mxu0 0.0
    %926 = vmatpush1.msra.mxu0 0.0
    %927 = vmatprep.subr.mxu0 0.0
    %928 = vmatpush1.msra.mxu0 0.0
    %929 = vmatprep.subr.mxu0 0.0
    %930 = vmatpush1.msra.mxu0 0.0
    %931 = vmatprep.subr.mxu0 0.0
    %932 = vmatpush1.msra.mxu0 0.0
    %933 = vmatprep.subr.mxu0 0.0
    %934 = vmatpush1.msra.mxu0 0.0
    %935 = vmatprep.subr.mxu0 0.0
    %936 = vmatpush1.msra.mxu0 0.0
    %937 = vmatprep.subr.mxu0 0.0
    %938 = vmatpush1.msra.mxu0 0.0
    %939 = vmatprep.subr.mxu0 0.0
    %940 = vmatpush1.msra.mxu0 0.0
    %941 = vmatprep.subr.mxu0 0.0
    %942 = vmatpush1.msra.mxu0 0.0
    %943 = vmatprep.subr.mxu0 0.0
    %944 = vmatpush1.msra.mxu0 0.0
    %945 = vmatprep.subr.mxu0 0.0
    %946 = vmatpush1.msra.mxu0 0.0
    %947 = vmatprep.subr.mxu0 0.0
    %948 = vmatpush1.msra.mxu0 0.0
    %949 = vmatprep.subr.mxu0 0.0
    %950 = vmatpush1.msra.mxu0 0.0
    %951 = vmatprep.subr.mxu0 0.0
    %952 = vmatpush1.msra.mxu0 0.0
    %953 = vmatprep.mubr.f32.mxu0 0.0
    %954 = vmatmul.mubr.f32.gmra.mrb[0].mxu0 %v887
    %v955 = vpop.f32.mrb[0].mxu0
    %v956 = vadd.f32 %v882, %v955
    %v957 = vpop.f32.mrb[0].mxu0
    %v958 = vadd.f32 %v884, %v957
    %959 = vdwg.mxu0
    %v960 = vadd.f32 %v956, %v249
    %v961 = vadd.f32 %v958, %v253
    %v962 = vxor.u32 %v960, 2147483648
    %v963 = vmul.f32 %v962, 1.442695
    %v964 = vpow.pop %v963
    %v965 = vadd.f32 %v964, 1.0
    %v966 = vrcp.pop %v965
    %v967 = vmul.f32 1.0, %v966
    %v968 = vtanh.pop %v961
    %v969 = vxor.u32 %v961, 2147483648
    %v970 = vmul.f32 %v969, 1.442695
    %v971 = vpow.pop %v970
    %v972 = vadd.f32 %v971, 1.0
    %v973 = vrcp.pop %v972
    %v974 = vmul.f32 1.0, %v973
    %v975 = vmul.f32 %v967, %v805
    %v976 = vmul.f32 %v967, %v968
    %978 = vrot.lane.b32.xlu0 %v976, 64
    %v979 = vpop.permute.xlu0 %978
    %v981 = vadd.f32 %v975, %v979
    %v982 = vtanh.pop %v981
    %v983 = vmul.f32 %v974, %v982
    %s984 = scalar_lea.vmem %s0, 40
    %v985 = vld [vmem:[%s984] sm:$0xff]
    %987 = vrot.lane.b32.xlu0 %v983, 64
    %v988 = vpop.permute.xlu0 %987
    %v989 = vsel %vm95, %v988, 0
    %991 = vmatprep.subr.mxu0 %v78
    %992 = vmatpush1.msra.mxu0 %v77
    %993 = vmatprep.subr.mxu0 %v80
    %994 = vmatpush1.msra.mxu0 %v79
    %995 = vmatprep.subr.mxu0 %v82
    %996 = vmatpush1.msra.mxu0 %v81
    %997 = vmatprep.subr.mxu0 %v84
    %998 = vmatpush1.msra.mxu0 %v83
    %999 = vmatprep.subr.mxu0 %v86
    %1000 = vmatpush1.msra.mxu0 %v85
    %1001 = vmatprep.subr.mxu0 %v88
    %1002 = vmatpush1.msra.mxu0 %v87
    %1003 = vmatprep.subr.mxu0 %v90
    %1004 = vmatpush1.msra.mxu0 %v89
    %1005 = vmatprep.subr.mxu0 %v92
    %1006 = vmatpush1.msra.mxu0 %v91
    %1007 = vmatprep.subr.mxu0 0.0
    %1008 = vmatpush1.msra.mxu0 0.0
    %1009 = vmatprep.subr.mxu0 0.0
    %1010 = vmatpush1.msra.mxu0 0.0
    %1011 = vmatprep.subr.mxu0 0.0
    %1012 = vmatpush1.msra.mxu0 0.0
    %1013 = vmatprep.subr.mxu0 0.0
    %1014 = vmatpush1.msra.mxu0 0.0
    %1015 = vmatprep.subr.mxu0 0.0
    %1016 = vmatpush1.msra.mxu0 0.0
    %1017 = vmatprep.subr.mxu0 0.0
    %1018 = vmatpush1.msra.mxu0 0.0
    %1019 = vmatprep.subr.mxu0 0.0
    %1020 = vmatpush1.msra.mxu0 0.0
    %1021 = vmatprep.subr.mxu0 0.0
    %1022 = vmatpush1.msra.mxu0 0.0
    %1023 = vmatprep.subr.mxu0 0.0
    %1024 = vmatpush1.msra.mxu0 0.0
    %1025 = vmatprep.subr.mxu0 0.0
    %1026 = vmatpush1.msra.mxu0 0.0
    %1027 = vmatprep.subr.mxu0 0.0
    %1028 = vmatpush1.msra.mxu0 0.0
    %1029 = vmatprep.subr.mxu0 0.0
    %1030 = vmatpush1.msra.mxu0 0.0
    %1031 = vmatprep.subr.mxu0 0.0
    %1032 = vmatpush1.msra.mxu0 0.0
    %1033 = vmatprep.subr.mxu0 0.0
    %1034 = vmatpush1.msra.mxu0 0.0
    %1035 = vmatprep.subr.mxu0 0.0
    %1036 = vmatpush1.msra.mxu0 0.0
    %1037 = vmatprep.subr.mxu0 0.0
    %1038 = vmatpush1.msra.mxu0 0.0
    %1039 = vmatprep.subr.mxu0 0.0
    %1040 = vmatpush1.msra.mxu0 0.0
    %1041 = vmatprep.subr.mxu0 0.0
    %1042 = vmatpush1.msra.mxu0 0.0
    %1043 = vmatprep.subr.mxu0 0.0
    %1044 = vmatpush1.msra.mxu0 0.0
    %1045 = vmatprep.subr.mxu0 0.0
    %1046 = vmatpush1.msra.mxu0 0.0
    %1047 = vmatprep.subr.mxu0 0.0
    %1048 = vmatpush1.msra.mxu0 0.0
    %1049 = vmatprep.subr.mxu0 0.0
    %1050 = vmatpush1.msra.mxu0 0.0
    %1051 = vmatprep.subr.mxu0 0.0
    %1052 = vmatpush1.msra.mxu0 0.0
    %1053 = vmatprep.subr.mxu0 0.0
    %1054 = vmatpush1.msra.mxu0 0.0
    %1055 = vmatprep.mubr.f32.mxu0 0.0
    %1056 = vmatmul.mubr.f32.gmra.mrb[0].mxu0 %v989
    %v1057 = vpop.f32.mrb[0].mxu0
    %v1058 = vadd.f32 0.0, %v1057
    %v1059 = vpop.f32.mrb[0].mxu0
    %v1060 = vadd.f32 0.0, %v1059
    %1061 = vdwg.mxu0
    %v1063 = vsel %vm170, %v985, 0
    %1065 = vmatprep.subr.mxu0 %v74
    %1066 = vmatpush1.msra.mxu0 %v73
    %1067 = vmatprep.subr.mxu0 %v76
    %1068 = vmatpush1.msra.mxu0 %v75
    %1069 = vmatprep.subr.mxu0 0.0
    %1070 = vmatpush1.msra.mxu0 0.0
    %1071 = vmatprep.subr.mxu0 0.0
    %1072 = vmatpush1.msra.mxu0 0.0
    %1073 = vmatprep.subr.mxu0 0.0
    %1074 = vmatpush1.msra.mxu0 0.0
    %1075 = vmatprep.subr.mxu0 0.0
    %1076 = vmatpush1.msra.mxu0 0.0
    %1077 = vmatprep.subr.mxu0 0.0
    %1078 = vmatpush1.msra.mxu0 0.0
    %1079 = vmatprep.subr.mxu0 0.0
    %1080 = vmatpush1.msra.mxu0 0.0
    %1081 = vmatprep.subr.mxu0 0.0
    %1082 = vmatpush1.msra.mxu0 0.0
    %1083 = vmatprep.subr.mxu0 0.0
    %1084 = vmatpush1.msra.mxu0 0.0
    %1085 = vmatprep.subr.mxu0 0.0
    %1086 = vmatpush1.msra.mxu0 0.0
    %1087 = vmatprep.subr.mxu0 0.0
    %1088 = vmatpush1.msra.mxu0 0.0
    %1089 = vmatprep.subr.mxu0 0.0
    %1090 = vmatpush1.msra.mxu0 0.0
    %1091 = vmatprep.subr.mxu0 0.0
    %1092 = vmatpush1.msra.mxu0 0.0
    %1093 = vmatprep.subr.mxu0 0.0
    %1094 = vmatpush1.msra.mxu0 0.0
    %1095 = vmatprep.subr.mxu0 0.0
    %1096 = vmatpush1.msra.mxu0 0.0
    %1097 = vmatprep.subr.mxu0 0.0
    %1098 = vmatpush1.msra.mxu0 0.0
    %1099 = vmatprep.subr.mxu0 0.0
    %1100 = vmatpush1.msra.mxu0 0.0
    %1101 = vmatprep.subr.mxu0 0.0
    %1102 = vmatpush1.msra.mxu0 0.0
    %1103 = vmatprep.subr.mxu0 0.0
    %1104 = vmatpush1.msra.mxu0 0.0
    %1105 = vmatprep.subr.mxu0 0.0
    %1106 = vmatpush1.msra.mxu0 0.0
    %1107 = vmatprep.subr.mxu0 0.0
    %1108 = vmatpush1.msra.mxu0 0.0
    %1109 = vmatprep.subr.mxu0 0.0
    %1110 = vmatpush1.msra.mxu0 0.0
    %1111 = vmatprep.subr.mxu0 0.0
    %1112 = vmatpush1.msra.mxu0 0.0
    %1113 = vmatprep.subr.mxu0 0.0
    %1114 = vmatpush1.msra.mxu0 0.0
    %1115 = vmatprep.subr.mxu0 0.0
    %1116 = vmatpush1.msra.mxu0 0.0
    %1117 = vmatprep.subr.mxu0 0.0
    %1118 = vmatpush1.msra.mxu0 0.0
    %1119 = vmatprep.subr.mxu0 0.0
    %1120 = vmatpush1.msra.mxu0 0.0
    %1121 = vmatprep.subr.mxu0 0.0
    %1122 = vmatpush1.msra.mxu0 0.0
    %1123 = vmatprep.subr.mxu0 0.0
    %1124 = vmatpush1.msra.mxu0 0.0
    %1125 = vmatprep.subr.mxu0 0.0
    %1126 = vmatpush1.msra.mxu0 0.0
    %1127 = vmatprep.subr.mxu0 0.0
    %1128 = vmatpush1.msra.mxu0 0.0
    %1129 = vmatprep.mubr.f32.mxu0 0.0
    %1130 = vmatmul.mubr.f32.gmra.mrb[0].mxu0 %v1063
    %v1131 = vpop.f32.mrb[0].mxu0
    %v1132 = vadd.f32 %v1058, %v1131
    %v1133 = vpop.f32.mrb[0].mxu0
    %v1134 = vadd.f32 %v1060, %v1133
    %1135 = vdwg.mxu0
    %v1136 = vadd.f32 %v1132, %v249
    %v1137 = vadd.f32 %v1134, %v253
    %v1138 = vxor.u32 %v1136, 2147483648
    %v1139 = vmul.f32 %v1138, 1.442695
    %v1140 = vpow.pop %v1139
    %v1141 = vadd.f32 %v1140, 1.0
    %v1142 = vrcp.pop %v1141
    %v1143 = vmul.f32 1.0, %v1142
    %v1144 = vtanh.pop %v1137
    %v1145 = vxor.u32 %v1137, 2147483648
    %v1146 = vmul.f32 %v1145, 1.442695
    %v1147 = vpow.pop %v1146
    %v1148 = vadd.f32 %v1147, 1.0
    %v1149 = vrcp.pop %v1148
    %v1150 = vmul.f32 1.0, %v1149
    %v1151 = vmul.f32 %v1143, %v981
    %v1152 = vmul.f32 %v1143, %v1144
    %1154 = vrot.lane.b32.xlu0 %v1152, 64
    %v1155 = vpop.permute.xlu0 %1154
    %v1157 = vadd.f32 %v1151, %v1155
    %v1158 = vtanh.pop %v1157
    %v1159 = vmul.f32 %v1150, %v1158
    %s1160 = scalar_lea.vmem %s0, 48
    %v1161 = vld [vmem:[%s1160] sm:$0xff]
    %1163 = vrot.lane.b32.xlu0 %v1159, 64
    %v1164 = vpop.permute.xlu0 %1163
    %v1165 = vsel %vm95, %v1164, 0
    %1167 = vmatprep.subr.mxu0 %v78
    %1168 = vmatpush1.msra.mxu0 %v77
    %1169 = vmatprep.subr.mxu0 %v80
    %1170 = vmatpush1.msra.mxu0 %v79
    %1171 = vmatprep.subr.mxu0 %v82
    %1172 = vmatpush1.msra.mxu0 %v81
    %1173 = vmatprep.subr.mxu0 %v84
    %1174 = vmatpush1.msra.mxu0 %v83
    %1175 = vmatprep.subr.mxu0 %v86
    %1176 = vmatpush1.msra.mxu0 %v85
    %1177 = vmatprep.subr.mxu0 %v88
    %1178 = vmatpush1.msra.mxu0 %v87
    %1179 = vmatprep.subr.mxu0 %v90
    %1180 = vmatpush1.msra.mxu0 %v89
    %1181 = vmatprep.subr.mxu0 %v92
    %1182 = vmatpush1.msra.mxu0 %v91
    %1183 = vmatprep.subr.mxu0 0.0
    %1184 = vmatpush1.msra.mxu0 0.0
    %1185 = vmatprep.subr.mxu0 0.0
    %1186 = vmatpush1.msra.mxu0 0.0
    %1187 = vmatprep.subr.mxu0 0.0
    %1188 = vmatpush1.msra.mxu0 0.0
    %1189 = vmatprep.subr.mxu0 0.0
    %1190 = vmatpush1.msra.mxu0 0.0
    %1191 = vmatprep.subr.mxu0 0.0
    %1192 = vmatpush1.msra.mxu0 0.0
    %1193 = vmatprep.subr.mxu0 0.0
    %1194 = vmatpush1.msra.mxu0 0.0
    %1195 = vmatprep.subr.mxu0 0.0
    %1196 = vmatpush1.msra.mxu0 0.0
    %1197 = vmatprep.subr.mxu0 0.0
    %1198 = vmatpush1.msra.mxu0 0.0
    %1199 = vmatprep.subr.mxu0 0.0
    %1200 = vmatpush1.msra.mxu0 0.0
    %1201 = vmatprep.subr.mxu0 0.0
    %1202 = vmatpush1.msra.mxu0 0.0
    %1203 = vmatprep.subr.mxu0 0.0
    %1204 = vmatpush1.msra.mxu0 0.0
    %1205 = vmatprep.subr.mxu0 0.0
    %1206 = vmatpush1.msra.mxu0 0.0
    %1207 = vmatprep.subr.mxu0 0.0
    %1208 = vmatpush1.msra.mxu0 0.0
    %1209 = vmatprep.subr.mxu0 0.0
    %1210 = vmatpush1.msra.mxu0 0.0
    %1211 = vmatprep.subr.mxu0 0.0
    %1212 = vmatpush1.msra.mxu0 0.0
    %1213 = vmatprep.subr.mxu0 0.0
    %1214 = vmatpush1.msra.mxu0 0.0
    %1215 = vmatprep.subr.mxu0 0.0
    %1216 = vmatpush1.msra.mxu0 0.0
    %1217 = vmatprep.subr.mxu0 0.0
    %1218 = vmatpush1.msra.mxu0 0.0
    %1219 = vmatprep.subr.mxu0 0.0
    %1220 = vmatpush1.msra.mxu0 0.0
    %1221 = vmatprep.subr.mxu0 0.0
    %1222 = vmatpush1.msra.mxu0 0.0
    %1223 = vmatprep.subr.mxu0 0.0
    %1224 = vmatpush1.msra.mxu0 0.0
    %1225 = vmatprep.subr.mxu0 0.0
    %1226 = vmatpush1.msra.mxu0 0.0
    %1227 = vmatprep.subr.mxu0 0.0
    %1228 = vmatpush1.msra.mxu0 0.0
    %1229 = vmatprep.subr.mxu0 0.0
    %1230 = vmatpush1.msra.mxu0 0.0
    %1231 = vmatprep.mubr.f32.mxu0 0.0
    %1232 = vmatmul.mubr.f32.gmra.mrb[0].mxu0 %v1165
    %v1233 = vpop.f32.mrb[0].mxu0
    %v1234 = vadd.f32 0.0, %v1233
    %v1235 = vpop.f32.mrb[0].mxu0
    %v1236 = vadd.f32 0.0, %v1235
    %1237 = vdwg.mxu0
    %v1239 = vsel %vm170, %v1161, 0
    %1241 = vmatprep.subr.mxu0 %v74
    %1242 = vmatpush1.msra.mxu0 %v73
    %1243 = vmatprep.subr.mxu0 %v76
    %1244 = vmatpush1.msra.mxu0 %v75
    %1245 = vmatprep.subr.mxu0 0.0
    %1246 = vmatpush1.msra.mxu0 0.0
    %1247 = vmatprep.subr.mxu0 0.0
    %1248 = vmatpush1.msra.mxu0 0.0
    %1249 = vmatprep.subr.mxu0 0.0
    %1250 = vmatpush1.msra.mxu0 0.0
    %1251 = vmatprep.subr.mxu0 0.0
    %1252 = vmatpush1.msra.mxu0 0.0
    %1253 = vmatprep.subr.mxu0 0.0
    %1254 = vmatpush1.msra.mxu0 0.0
    %1255 = vmatprep.subr.mxu0 0.0
    %1256 = vmatpush1.msra.mxu0 0.0
    %1257 = vmatprep.subr.mxu0 0.0
    %1258 = vmatpush1.msra.mxu0 0.0
    %1259 = vmatprep.subr.mxu0 0.0
    %1260 = vmatpush1.msra.mxu0 0.0
    %1261 = vmatprep.subr.mxu0 0.0
    %1262 = vmatpush1.msra.mxu0 0.0
    %1263 = vmatprep.subr.mxu0 0.0
    %1264 = vmatpush1.msra.mxu0 0.0
    %1265 = vmatprep.subr.mxu0 0.0
    %1266 = vmatpush1.msra.mxu0 0.0
    %1267 = vmatprep.subr.mxu0 0.0
    %1268 = vmatpush1.msra.mxu0 0.0
    %1269 = vmatprep.subr.mxu0 0.0
    %1270 = vmatpush1.msra.mxu0 0.0
    %1271 = vmatprep.subr.mxu0 0.0
    %1272 = vmatpush1.msra.mxu0 0.0
    %1273 = vmatprep.subr.mxu0 0.0
    %1274 = vmatpush1.msra.mxu0 0.0
    %1275 = vmatprep.subr.mxu0 0.0
    %1276 = vmatpush1.msra.mxu0 0.0
    %1277 = vmatprep.subr.mxu0 0.0
    %1278 = vmatpush1.msra.mxu0 0.0
    %1279 = vmatprep.subr.mxu0 0.0
    %1280 = vmatpush1.msra.mxu0 0.0
    %1281 = vmatprep.subr.mxu0 0.0
    %1282 = vmatpush1.msra.mxu0 0.0
    %1283 = vmatprep.subr.mxu0 0.0
    %1284 = vmatpush1.msra.mxu0 0.0
    %1285 = vmatprep.subr.mxu0 0.0
    %1286 = vmatpush1.msra.mxu0 0.0
    %1287 = vmatprep.subr.mxu0 0.0
    %1288 = vmatpush1.msra.mxu0 0.0
    %1289 = vmatprep.subr.mxu0 0.0
    %1290 = vmatpush1.msra.mxu0 0.0
    %1291 = vmatprep.subr.mxu0 0.0
    %1292 = vmatpush1.msra.mxu0 0.0
    %1293 = vmatprep.subr.mxu0 0.0
    %1294 = vmatpush1.msra.mxu0 0.0
    %1295 = vmatprep.subr.mxu0 0.0
    %1296 = vmatpush1.msra.mxu0 0.0
    %1297 = vmatprep.subr.mxu0 0.0
    %1298 = vmatpush1.msra.mxu0 0.0
    %1299 = vmatprep.subr.mxu0 0.0
    %1300 = vmatpush1.msra.mxu0 0.0
    %1301 = vmatprep.subr.mxu0 0.0
    %1302 = vmatpush1.msra.mxu0 0.0
    %1303 = vmatprep.subr.mxu0 0.0
    %1304 = vmatpush1.msra.mxu0 0.0
    %1305 = vmatprep.mubr.f32.mxu0 0.0
    %1306 = vmatmul.mubr.f32.gmra.mrb[0].mxu0 %v1239
    %v1307 = vpop.f32.mrb[0].mxu0
    %v1308 = vadd.f32 %v1234, %v1307
    %v1309 = vpop.f32.mrb[0].mxu0
    %v1310 = vadd.f32 %v1236, %v1309
    %1311 = vdwg.mxu0
    %v1312 = vadd.f32 %v1308, %v249
    %v1313 = vadd.f32 %v1310, %v253
    %v1314 = vxor.u32 %v1312, 2147483648
    %v1315 = vmul.f32 %v1314, 1.442695
    %v1316 = vpow.pop %v1315
    %v1317 = vadd.f32 %v1316, 1.0
    %v1318 = vrcp.pop %v1317
    %v1319 = vmul.f32 1.0, %v1318
    %v1320 = vtanh.pop %v1313
    %v1321 = vxor.u32 %v1313, 2147483648
    %v1322 = vmul.f32 %v1321, 1.442695
    %v1323 = vpow.pop %v1322
    %v1324 = vadd.f32 %v1323, 1.0
    %v1325 = vrcp.pop %v1324
    %v1326 = vmul.f32 1.0, %v1325
    %v1327 = vmul.f32 %v1319, %v1157
    %v1328 = vmul.f32 %v1319, %v1320
    %1330 = vrot.lane.b32.xlu0 %v1328, 64
    %v1331 = vpop.permute.xlu0 %1330
    %v1333 = vadd.f32 %v1327, %v1331
    %v1334 = vtanh.pop %v1333
    %v1335 = vmul.f32 %v1326, %v1334
    %s1336 = scalar_lea.vmem %s0, 56
    %v1337 = vld [vmem:[%s1336] sm:$0xff]
    %1339 = vrot.lane.b32.xlu0 %v1335, 64
    %v1340 = vpop.permute.xlu0 %1339
    %v1341 = vsel %vm95, %v1340, 0
    %1343 = vmatprep.subr.mxu0 %v78
    %1344 = vmatpush1.msra.mxu0 %v77
    %1345 = vmatprep.subr.mxu0 %v80
    %1346 = vmatpush1.msra.mxu0 %v79
    %1347 = vmatprep.subr.mxu0 %v82
    %1348 = vmatpush1.msra.mxu0 %v81
    %1349 = vmatprep.subr.mxu0 %v84
    %1350 = vmatpush1.msra.mxu0 %v83
    %1351 = vmatprep.subr.mxu0 %v86
    %1352 = vmatpush1.msra.mxu0 %v85
    %1353 = vmatprep.subr.mxu0 %v88
    %1354 = vmatpush1.msra.mxu0 %v87
    %1355 = vmatprep.subr.mxu0 %v90
    %1356 = vmatpush1.msra.mxu0 %v89
    %1357 = vmatprep.subr.mxu0 %v92
    %1358 = vmatpush1.msra.mxu0 %v91
    %1359 = vmatprep.subr.mxu0 0.0
    %1360 = vmatpush1.msra.mxu0 0.0
    %1361 = vmatprep.subr.mxu0 0.0
    %1362 = vmatpush1.msra.mxu0 0.0
    %1363 = vmatprep.subr.mxu0 0.0
    %1364 = vmatpush1.msra.mxu0 0.0
    %1365 = vmatprep.subr.mxu0 0.0
    %1366 = vmatpush1.msra.mxu0 0.0
    %1367 = vmatprep.subr.mxu0 0.0
    %1368 = vmatpush1.msra.mxu0 0.0
    %1369 = vmatprep.subr.mxu0 0.0
    %1370 = vmatpush1.msra.mxu0 0.0
    %1371 = vmatprep.subr.mxu0 0.0
    %1372 = vmatpush1.msra.mxu0 0.0
    %1373 = vmatprep.subr.mxu0 0.0
    %1374 = vmatpush1.msra.mxu0 0.0
    %1375 = vmatprep.subr.mxu0 0.0
    %1376 = vmatpush1.msra.mxu0 0.0
    %1377 = vmatprep.subr.mxu0 0.0
    %1378 = vmatpush1.msra.mxu0 0.0
    %1379 = vmatprep.subr.mxu0 0.0
    %1380 = vmatpush1.msra.mxu0 0.0
    %1381 = vmatprep.subr.mxu0 0.0
    %1382 = vmatpush1.msra.mxu0 0.0
    %1383 = vmatprep.subr.mxu0 0.0
    %1384 = vmatpush1.msra.mxu0 0.0
    %1385 = vmatprep.subr.mxu0 0.0
    %1386 = vmatpush1.msra.mxu0 0.0
    %1387 = vmatprep.subr.mxu0 0.0
    %1388 = vmatpush1.msra.mxu0 0.0
    %1389 = vmatprep.subr.mxu0 0.0
    %1390 = vmatpush1.msra.mxu0 0.0
    %1391 = vmatprep.subr.mxu0 0.0
    %1392 = vmatpush1.msra.mxu0 0.0
    %1393 = vmatprep.subr.mxu0 0.0
    %1394 = vmatpush1.msra.mxu0 0.0
    %1395 = vmatprep.subr.mxu0 0.0
    %1396 = vmatpush1.msra.mxu0 0.0
    %1397 = vmatprep.subr.mxu0 0.0
    %1398 = vmatpush1.msra.mxu0 0.0
    %1399 = vmatprep.subr.mxu0 0.0
    %1400 = vmatpush1.msra.mxu0 0.0
    %1401 = vmatprep.subr.mxu0 0.0
    %1402 = vmatpush1.msra.mxu0 0.0
    %1403 = vmatprep.subr.mxu0 0.0
    %1404 = vmatpush1.msra.mxu0 0.0
    %1405 = vmatprep.subr.mxu0 0.0
    %1406 = vmatpush1.msra.mxu0 0.0
    %1407 = vmatprep.mubr.f32.mxu0 0.0
    %1408 = vmatmul.mubr.f32.gmra.mrb[0].mxu0 %v1341
    %v1409 = vpop.f32.mrb[0].mxu0
    %v1410 = vadd.f32 0.0, %v1409
    %v1411 = vpop.f32.mrb[0].mxu0
    %v1412 = vadd.f32 0.0, %v1411
    %1413 = vdwg.mxu0
    %v1415 = vsel %vm170, %v1337, 0
    %1417 = vmatprep.subr.mxu0 %v74
    %1418 = vmatpush1.msra.mxu0 %v73
    %1419 = vmatprep.subr.mxu0 %v76
    %1420 = vmatpush1.msra.mxu0 %v75
    %1421 = vmatprep.subr.mxu0 0.0
    %1422 = vmatpush1.msra.mxu0 0.0
    %1423 = vmatprep.subr.mxu0 0.0
    %1424 = vmatpush1.msra.mxu0 0.0
    %1425 = vmatprep.subr.mxu0 0.0
    %1426 = vmatpush1.msra.mxu0 0.0
    %1427 = vmatprep.subr.mxu0 0.0
    %1428 = vmatpush1.msra.mxu0 0.0
    %1429 = vmatprep.subr.mxu0 0.0
    %1430 = vmatpush1.msra.mxu0 0.0
    %1431 = vmatprep.subr.mxu0 0.0
    %1432 = vmatpush1.msra.mxu0 0.0
    %1433 = vmatprep.subr.mxu0 0.0
    %1434 = vmatpush1.msra.mxu0 0.0
    %1435 = vmatprep.subr.mxu0 0.0
    %1436 = vmatpush1.msra.mxu0 0.0
    %1437 = vmatprep.subr.mxu0 0.0
    %1438 = vmatpush1.msra.mxu0 0.0
    %1439 = vmatprep.subr.mxu0 0.0
    %1440 = vmatpush1.msra.mxu0 0.0
    %1441 = vmatprep.subr.mxu0 0.0
    %1442 = vmatpush1.msra.mxu0 0.0
    %1443 = vmatprep.subr.mxu0 0.0
    %1444 = vmatpush1.msra.mxu0 0.0
    %1445 = vmatprep.subr.mxu0 0.0
    %1446 = vmatpush1.msra.mxu0 0.0
    %1447 = vmatprep.subr.mxu0 0.0
    %1448 = vmatpush1.msra.mxu0 0.0
    %1449 = vmatprep.subr.mxu0 0.0
    %1450 = vmatpush1.msra.mxu0 0.0
    %1451 = vmatprep.subr.mxu0 0.0
    %1452 = vmatpush1.msra.mxu0 0.0
    %1453 = vmatprep.subr.mxu0 0.0
    %1454 = vmatpush1.msra.mxu0 0.0
    %1455 = vmatprep.subr.mxu0 0.0
    %1456 = vmatpush1.msra.mxu0 0.0
    %1457 = vmatprep.subr.mxu0 0.0
    %1458 = vmatpush1.msra.mxu0 0.0
    %1459 = vmatprep.subr.mxu0 0.0
    %1460 = vmatpush1.msra.mxu0 0.0
    %1461 = vmatprep.subr.mxu0 0.0
    %1462 = vmatpush1.msra.mxu0 0.0
    %1463 = vmatprep.subr.mxu0 0.0
    %1464 = vmatpush1.msra.mxu0 0.0
    %1465 = vmatprep.subr.mxu0 0.0
    %1466 = vmatpush1.msra.mxu0 0.0
    %1467 = vmatprep.subr.mxu0 0.0
    %1468 = vmatpush1.msra.mxu0 0.0
    %1469 = vmatprep.subr.mxu0 0.0
    %1470 = vmatpush1.msra.mxu0 0.0
    %1471 = vmatprep.subr.mxu0 0.0
    %1472 = vmatpush1.msra.mxu0 0.0
    %1473 = vmatprep.subr.mxu0 0.0
    %1474 = vmatpush1.msra.mxu0 0.0
    %1475 = vmatprep.subr.mxu0 0.0
    %1476 = vmatpush1.msra.mxu0 0.0
    %1477 = vmatprep.subr.mxu0 0.0
    %1478 = vmatpush1.msra.mxu0 0.0
    %1479 = vmatprep.subr.mxu0 0.0
    %1480 = vmatpush1.msra.mxu0 0.0
    %1481 = vmatprep.mubr.f32.mxu0 0.0
    %1482 = vmatmul.mubr.f32.gmra.mrb[0].mxu0 %v1415
    %v1483 = vpop.f32.mrb[0].mxu0
    %v1484 = vadd.f32 %v1410, %v1483
    %v1485 = vpop.f32.mrb[0].mxu0
    %v1486 = vadd.f32 %v1412, %v1485
    %1487 = vdwg.mxu0
    %v1488 = vadd.f32 %v1484, %v249
    %v1489 = vadd.f32 %v1486, %v253
    %v1490 = vxor.u32 %v1488, 2147483648
    %v1491 = vmul.f32 %v1490, 1.442695
    %v1492 = vpow.pop %v1491
    %v1493 = vadd.f32 %v1492, 1.0
    %v1494 = vrcp.pop %v1493
    %v1495 = vmul.f32 1.0, %v1494
    %v1496 = vtanh.pop %v1489
    %v1497 = vxor.u32 %v1489, 2147483648
    %v1498 = vmul.f32 %v1497, 1.442695
    %v1499 = vpow.pop %v1498
    %v1500 = vadd.f32 %v1499, 1.0
    %v1501 = vrcp.pop %v1500
    %v1502 = vmul.f32 1.0, %v1501
    %v1503 = vmul.f32 %v1495, %v1333
    %v1504 = vmul.f32 %v1495, %v1496
    %1506 = vrot.lane.b32.xlu0 %v1504, 64
    %v1507 = vpop.permute.xlu0 %1506
    %v1509 = vadd.f32 %v1503, %v1507
    %v1510 = vtanh.pop %v1509
    %v1511 = vmul.f32 %v1502, %v1510
    %v1512 = vld [vmem:[%s4] sm:$0xff]
    %v1513 = vld [vmem:[%s4 + $0x8] sm:$0xff]
    %v1514 = vld [vmem:[%s4 + $0x10] sm:$0xff]
    %v1515 = vld [vmem:[%s4 + $0x18] sm:$0xff]
    %v1516 = vld [vmem:[#allocation5] sm:$0x1]
    %v1518 = vlaneseq
    %v1519 = vshrl.u32 %v1518, 7
    %v1520 = vsub.s32 0, %v1519
    %v1521 = vrot.slane %v1516, %v1520
    %1524 = vrot.lane.b32.xlu0 %v1511, 32
    %v1525 = vpop.permute.xlu0 %1524
    %vm1526 = vcmask 261120
    %v1527 = vsel %vm1526, %v1525, 0
    %1529 = vmatprep.subr.mxu0 0.0
    %1530 = vmatpush1.msra.mxu0 %v1512
    %1531 = vmatprep.subr.mxu0 0.0
    %1532 = vmatpush1.msra.mxu0 %v1513
    %1533 = vmatprep.subr.mxu0 0.0
    %1534 = vmatpush1.msra.mxu0 %v1514
    %1535 = vmatprep.subr.mxu0 0.0
    %1536 = vmatpush1.msra.mxu0 %v1515
    %1537 = vmatprep.subr.mxu0 0.0
    %1538 = vmatpush1.msra.mxu0 0.0
    %1539 = vmatprep.subr.mxu0 0.0
    %1540 = vmatpush1.msra.mxu0 0.0
    %1541 = vmatprep.subr.mxu0 0.0
    %1542 = vmatpush1.msra.mxu0 0.0
    %1543 = vmatprep.subr.mxu0 0.0
    %1544 = vmatpush1.msra.mxu0 0.0
    %1545 = vmatprep.subr.mxu0 0.0
    %1546 = vmatpush1.msra.mxu0 0.0
    %1547 = vmatprep.subr.mxu0 0.0
    %1548 = vmatpush1.msra.mxu0 0.0
    %1549 = vmatprep.subr.mxu0 0.0
    %1550 = vmatpush1.msra.mxu0 0.0
    %1551 = vmatprep.subr.mxu0 0.0
    %1552 = vmatpush1.msra.mxu0 0.0
    %1553 = vmatprep.subr.mxu0 0.0
    %1554 = vmatpush1.msra.mxu0 0.0
    %1555 = vmatprep.subr.mxu0 0.0
    %1556 = vmatpush1.msra.mxu0 0.0
    %1557 = vmatprep.subr.mxu0 0.0
    %1558 = vmatpush1.msra.mxu0 0.0
    %1559 = vmatprep.subr.mxu0 0.0
    %1560 = vmatpush1.msra.mxu0 0.0
    %1561 = vmatprep.subr.mxu0 0.0
    %1562 = vmatpush1.msra.mxu0 0.0
    %1563 = vmatprep.subr.mxu0 0.0
    %1564 = vmatpush1.msra.mxu0 0.0
    %1565 = vmatprep.subr.mxu0 0.0
    %1566 = vmatpush1.msra.mxu0 0.0
    %1567 = vmatprep.subr.mxu0 0.0
    %1568 = vmatpush1.msra.mxu0 0.0
    %1569 = vmatprep.subr.mxu0 0.0
    %1570 = vmatpush1.msra.mxu0 0.0
    %1571 = vmatprep.subr.mxu0 0.0
    %1572 = vmatpush1.msra.mxu0 0.0
    %1573 = vmatprep.subr.mxu0 0.0
    %1574 = vmatpush1.msra.mxu0 0.0
    %1575 = vmatprep.subr.mxu0 0.0
    %1576 = vmatpush1.msra.mxu0 0.0
    %1577 = vmatprep.subr.mxu0 0.0
    %1578 = vmatpush1.msra.mxu0 0.0
    %1579 = vmatprep.subr.mxu0 0.0
    %1580 = vmatpush1.msra.mxu0 0.0
    %1581 = vmatprep.subr.mxu0 0.0
    %1582 = vmatpush1.msra.mxu0 0.0
    %1583 = vmatprep.subr.mxu0 0.0
    %1584 = vmatpush1.msra.mxu0 0.0
    %1585 = vmatprep.subr.mxu0 0.0
    %1586 = vmatpush1.msra.mxu0 0.0
    %1587 = vmatprep.subr.mxu0 0.0
    %1588 = vmatpush1.msra.mxu0 0.0
    %1589 = vmatprep.subr.mxu0 0.0
    %1590 = vmatpush1.msra.mxu0 0.0
    %1591 = vmatprep.subr.mxu0 0.0
    %1592 = vmatpush1.msra.mxu0 0.0
    %1593 = vmatprep.mubr.f32.mxu0 0.0
    %1594 = vmatmul.mubr.f32.gmra.mrb[0].mxu0 %v1527
    %v1595 = vpop.f32.mrb[0].mxu0
    %v1596 = vadd.f32 %v1521, %v1595
    %v1597 = vpop.f32.mrb[0].mxu0
    %1598 = vdwg.mxu0
    %vm1599 = vcmask 15360
    %v1600 = vsel %vm1599, %v1596, -inf
    %1601 = vmax.xlane.f32.xlu0 %v1600
    %v1602 = vpop.xlane.xlu0 %1601
    %v1603 = vsub.f32 %v1596, %v1602
    %v1604 = vmul.f32 %v1603, 1.442695
    %v1605 = vpow.pop %v1604
    %v1606 = vsel %vm1599, %v1605, 0.0
    %1607 = vadd.xlane.f32.xlu0 %v1606
    %v1608 = vpop.xlane.xlu0 %1607
    %v1609 = vrcp.pop %v1608
    %v1610 = vmul.f32 %v1605, %v1609
    %1612 = vset.pattern.permute.xlu0 0
    %1613 = vperm.xlu0 %1612, %v1610
    %v1614 = vpop.permute.xlu0 %1613
    %v1616 = vmul.f32 %v1614, %v1511
    %1617 = vset.pattern.permute.xlu0 1
    %1618 = vperm.xlu0 %1617, %v1610
    %v1619 = vpop.permute.xlu0 %1618
    %v1621 = vmul.f32 %v1619, %v1511
    %1623 = vrot.lane.b32.xlu0 %v1621, 112
    %v1624 = vpop.permute.xlu0 %1623
    %v1626 = vadd.f32 %v1616, %v1624
    %vm1627 = vcmask 31760
    %v1628 = vsel %vm1627, %v1596, -inf
    %1629 = vmax.xlane.f32.xlu0 %v1628
    %v1630 = vpop.xlane.xlu0 %1629
    %v1631 = vsub.f32 %v1596, %v1630
    %v1632 = vmul.f32 %v1631, 1.442695
    %v1633 = vpow.pop %v1632
    %1635 = vrot.lane.b32.xlu0 %v1633, 126
    %v1636 = vpop.permute.xlu0 %1635
    %v1638 = vsel %vm1599, %v1636, 0.0
    %1639 = vadd.xlane.f32.xlu0 %v1638
    %v1640 = vpop.xlane.xlu0 %1639
    %v1641 = vrcp.pop %v1640
    %v1642 = vmul.f32 %v1633, %v1641
    %1644 = vset.pattern.permute.xlu0 2
    %1645 = vperm.xlu0 %1644, %v1642
    %v1646 = vpop.permute.xlu0 %1645
    %v1648 = vmul.f32 %v1646, %v1511
    %1649 = vset.pattern.permute.xlu0 3
    %1650 = vperm.xlu0 %1649, %v1642
    %v1651 = vpop.permute.xlu0 %1650
    %v1653 = vmul.f32 %v1651, %v1511
    %1655 = vrot.lane.b32.xlu0 %v1653, 112
    %v1656 = vpop.permute.xlu0 %1655
    %v1658 = vadd.f32 %v1648, %v1656
    %1660 = vrot.lane.b32.xlu0 %v1626, 64
    %v1661 = vpop.permute.xlu0 %1660
    %1664 = vrot.lane.b32.xlu0 %v1658, 80
    %v1665 = vpop.permute.xlu0 %1664
    %v1667 = vsel %vm170, %v1661, %v1665
    %v1668 = vld [vmem:[%s6] sm:$0xff]
    %v1669 = vld [vmem:[%s6 + $0x8] sm:$0xff]
    %v1670 = vld [vmem:[%s6 + $0x10] sm:$0xff]
    %v1671 = vld [vmem:[%s6 + $0x18] sm:$0xff]
    %v1672 = vld [vmem:[#allocation7] sm:$0x1]
    %v1674 = vlaneseq
    %v1675 = vshrl.u32 %v1674, 7
    %v1676 = vsub.s32 0, %v1675
    %v1677 = vrot.slane %v1672, %v1676
    %v1680 = vsel %vm1526, %v1667, 0
    %1682 = vmatprep.subr.mxu0 0.0
    %1683 = vmatpush1.msra.mxu0 %v1668
    %1684 = vmatprep.subr.mxu0 0.0
    %1685 = vmatpush1.msra.mxu0 %v1669
    %1686 = vmatprep.subr.mxu0 0.0
    %1687 = vmatpush1.msra.mxu0 %v1670
    %1688 = vmatprep.subr.mxu0 0.0
    %1689 = vmatpush1.msra.mxu0 %v1671
    %1690 = vmatprep.subr.mxu0 0.0
    %1691 = vmatpush1.msra.mxu0 0.0
    %1692 = vmatprep.subr.mxu0 0.0
    %1693 = vmatpush1.msra.mxu0 0.0
    %1694 = vmatprep.subr.mxu0 0.0
    %1695 = vmatpush1.msra.mxu0 0.0
    %1696 = vmatprep.subr.mxu0 0.0
    %1697 = vmatpush1.msra.mxu0 0.0
    %1698 = vmatprep.subr.mxu0 0.0
    %1699 = vmatpush1.msra.mxu0 0.0
    %1700 = vmatprep.subr.mxu0 0.0
    %1701 = vmatpush1.msra.mxu0 0.0
    %1702 = vmatprep.subr.mxu0 0.0
    %1703 = vmatpush1.msra.mxu0 0.0
    %1704 = vmatprep.subr.mxu0 0.0
    %1705 = vmatpush1.msra.mxu0 0.0
    %1706 = vmatprep.subr.mxu0 0.0
    %1707 = vmatpush1.msra.mxu0 0.0
    %1708 = vmatprep.subr.mxu0 0.0
    %1709 = vmatpush1.msra.mxu0 0.0
    %1710 = vmatprep.subr.mxu0 0.0
    %1711 = vmatpush1.msra.mxu0 0.0
    %1712 = vmatprep.subr.mxu0 0.0
    %1713 = vmatpush1.msra.mxu0 0.0
    %1714 = vmatprep.subr.mxu0 0.0
    %1715 = vmatpush1.msra.mxu0 0.0
    %1716 = vmatprep.subr.mxu0 0.0
    %1717 = vmatpush1.msra.mxu0 0.0
    %1718 = vmatprep.subr.mxu0 0.0
    %1719 = vmatpush1.msra.mxu0 0.0
    %1720 = vmatprep.subr.mxu0 0.0
    %1721 = vmatpush1.msra.mxu0 0.0
    %1722 = vmatprep.subr.mxu0 0.0
    %1723 = vmatpush1.msra.mxu0 0.0
    %1724 = vmatprep.subr.mxu0 0.0
    %1725 = vmatpush1.msra.mxu0 0.0
    %1726 = vmatprep.subr.mxu0 0.0
    %1727 = vmatpush1.msra.mxu0 0.0
    %1728 = vmatprep.subr.mxu0 0.0
    %1729 = vmatpush1.msra.mxu0 0.0
    %1730 = vmatprep.subr.mxu0 0.0
    %1731 = vmatpush1.msra.mxu0 0.0
    %1732 = vmatprep.subr.mxu0 0.0
    %1733 = vmatpush1.msra.mxu0 0.0
    %1734 = vmatprep.subr.mxu0 0.0
    %1735 = vmatpush1.msra.mxu0 0.0
    %1736 = vmatprep.subr.mxu0 0.0
    %1737 = vmatpush1.msra.mxu0 0.0
    %1738 = vmatprep.subr.mxu0 0.0
    %1739 = vmatpush1.msra.mxu0 0.0
    %1740 = vmatprep.subr.mxu0 0.0
    %1741 = vmatpush1.msra.mxu0 0.0
    %1742 = vmatprep.subr.mxu0 0.0
    %1743 = vmatpush1.msra.mxu0 0.0
    %1744 = vmatprep.subr.mxu0 0.0
    %1745 = vmatpush1.msra.mxu0 0.0
    %1746 = vmatprep.mubr.f32.mxu0 0.0
    %1747 = vmatmul.mubr.f32.gmra.mrb[0].mxu0 %v1680
    %v1748 = vpop.f32.mrb[0].mxu0
    %v1749 = vadd.f32 %v1677, %v1748
    %v1750 = vpop.f32.mrb[0].mxu0
    %1751 = vdwg.mxu0
    %vm1752 = vcmp.gt.f32.partialorder %v1749, 0.0
    %v1753 = vmul.f32 %v1749, 0.01
    %v1754 = vsel %vm1752, %v1749, %v1753
    %v1755 = vld [vmem:[%s8] sm:$0xff]
    %v1756 = vld [vmem:[%s8 + $0x8] sm:$0xff]
    %v1757 = vld [vmem:[%s8 + $0x10] sm:$0xff]
    %v1758 = vld [vmem:[%s8 + $0x18] sm:$0xff]
    %v1759 = vld [vmem:[%s8 + $0x20] sm:$0xff]
    %v1760 = vld [vmem:[%s8 + $0x28] sm:$0xff]
    %v1761 = vld [vmem:[%s8 + $0x30] sm:$0xff]
    %v1762 = vld [vmem:[%s8 + $0x38] sm:$0xff]
    %v1763 = vld [vmem:[%s9] sm:$0x1]
    %v1765 = vlaneseq
    %v1766 = vshrl.u32 %v1765, 7
    %v1767 = vsub.s32 0, %v1766
    %v1768 = vrot.slane %v1763, %v1767
    %v1771 = vsel %vm95, %v1754, 0
    %1773 = vmatprep.subr.mxu0 0.0
    %1774 = vmatpush1.msra.mxu0 %v1755
    %1775 = vmatprep.subr.mxu0 0.0
    %1776 = vmatpush1.msra.mxu0 %v1756
    %1777 = vmatprep.subr.mxu0 0.0
    %1778 = vmatpush1.msra.mxu0 %v1757
    %1779 = vmatprep.subr.mxu0 0.0
    %1780 = vmatpush1.msra.mxu0 %v1758
    %1781 = vmatprep.subr.mxu0 0.0
    %1782 = vmatpush1.msra.mxu0 %v1759
    %1783 = vmatprep.subr.mxu0 0.0
    %1784 = vmatpush1.msra.mxu0 %v1760
    %1785 = vmatprep.subr.mxu0 0.0
    %1786 = vmatpush1.msra.mxu0 %v1761
    %1787 = vmatprep.subr.mxu0 0.0
    %1788 = vmatpush1.msra.mxu0 %v1762
    %1789 = vmatprep.subr.mxu0 0.0
    %1790 = vmatpush1.msra.mxu0 0.0
    %1791 = vmatprep.subr.mxu0 0.0
    %1792 = vmatpush1.msra.mxu0 0.0
    %1793 = vmatprep.subr.mxu0 0.0
    %1794 = vmatpush1.msra.mxu0 0.0
    %1795 = vmatprep.subr.mxu0 0.0
    %1796 = vmatpush1.msra.mxu0 0.0
    %1797 = vmatprep.subr.mxu0 0.0
    %1798 = vmatpush1.msra.mxu0 0.0
    %1799 = vmatprep.subr.mxu0 0.0
    %1800 = vmatpush1.msra.mxu0 0.0
    %1801 = vmatprep.subr.mxu0 0.0
    %1802 = vmatpush1.msra.mxu0 0.0
    %1803 = vmatprep.subr.mxu0 0.0
    %1804 = vmatpush1.msra.mxu0 0.0
    %1805 = vmatprep.subr.mxu0 0.0
    %1806 = vmatpush1.msra.mxu0 0.0
    %1807 = vmatprep.subr.mxu0 0.0
    %1808 = vmatpush1.msra.mxu0 0.0
    %1809 = vmatprep.subr.mxu0 0.0
    %1810 = vmatpush1.msra.mxu0 0.0
    %1811 = vmatprep.subr.mxu0 0.0
    %1812 = vmatpush1.msra.mxu0 0.0
    %1813 = vmatprep.subr.mxu0 0.0
    %1814 = vmatpush1.msra.mxu0 0.0
    %1815 = vmatprep.subr.mxu0 0.0
    %1816 = vmatpush1.msra.mxu0 0.0
    %1817 = vmatprep.subr.mxu0 0.0
    %1818 = vmatpush1.msra.mxu0 0.0
    %1819 = vmatprep.subr.mxu0 0.0
    %1820 = vmatpush1.msra.mxu0 0.0
    %1821 = vmatprep.subr.mxu0 0.0
    %1822 = vmatpush1.msra.mxu0 0.0
    %1823 = vmatprep.subr.mxu0 0.0
    %1824 = vmatpush1.msra.mxu0 0.0
    %1825 = vmatprep.subr.mxu0 0.0
    %1826 = vmatpush1.msra.mxu0 0.0
    %1827 = vmatprep.subr.mxu0 0.0
    %1828 = vmatpush1.msra.mxu0 0.0
    %1829 = vmatprep.subr.mxu0 0.0
    %1830 = vmatpush1.msra.mxu0 0.0
    %1831 = vmatprep.subr.mxu0 0.0
    %1832 = vmatpush1.msra.mxu0 0.0
    %1833 = vmatprep.subr.mxu0 0.0
    %1834 = vmatpush1.msra.mxu0 0.0
    %1835 = vmatprep.subr.mxu0 0.0
    %1836 = vmatpush1.msra.mxu0 0.0
    %1837 = vmatprep.mubr.f32.mxu0 0.0
    %1838 = vmatmul.mubr.f32.gmra.mrb[0].mxu0 %v1771
    %v1839 = vpop.f32.mrb[0].mxu0
    %v1840 = vadd.f32 %v1768, %v1839
    %v1841 = vpop.f32.mrb[0].mxu0
    %1842 = vdwg.mxu0
    %v1843 = vxor.u32 %v1840, 2147483648
    %v1844 = vmul.f32 %v1843, 1.442695
    %v1845 = vpow.pop %v1844
    %v1846 = vadd.f32 %v1845, 1.0
    %v1847 = vrcp.pop %v1846
    %v1848 = vmul.f32 1.0, %v1847
    %1849 = vst.msk [vmem:[#allocation8] sm:$0xff] %vm170, %v1848
    // Predicated region
    $region54: #{tpu_custom_call.1} parent=1 // pred_check
      _
    $region55: #{tpu_custom_call.1} parent=1 // pred_check_branch
      %1851 = sbr.rel (0) target = $region57
    $region56: #{tpu_custom_call.1} parent=1 // pred_region
      %s1853 = ssub.s32 128, 128
      %1854 = vsyncadd [#allocation4], %s1853
      %s1856 = sshll.u32 [#allocation8], 4
      %s1857 = int_to_ptr.vmem [resolvable:$true] %s1856
      %1859 = dma.vmem_to_hbm [thread:$0]  %s1857, 128, %s10, [#allocation4]
    $region57: #{tpu_custom_call.1} parent=1 // pred_fallthru
      _
    // Predicated region
    $region58: #{tpu_custom_call.1} parent=1 // pred_check
      _
    $region59: #{tpu_custom_call.1} parent=1 // pred_check_branch
      %1861 = sbr.rel (0) target = $region61
    $region60: #{tpu_custom_call.1} parent=1 // pred_region
      %1862 = dma.done [#allocation4], 128
    $region61: #{tpu_custom_call.1} parent=1 // pred_fallthru
      _
    %1863 = vsyncpa [#allocation3], 1
    %1864 = vsyncpa [#allocation6], 1
    %1865 = vsyncpa [#allocation4], 1

</llo_original>
